<compile_context>
chip_gen: v7x
topology: tpu7x:2x2x1
jax: 0.10.0
libtpu: 0.0.40
codegen_flags: <defaults>
</compile_context>

<pallas_src>
import jax
import jax.numpy as jnp
from jax.experimental import pallas as pl
from jax.experimental.pallas import tpu as pltpu

_BN_EPS = 1e-5
# MXU operand dtype (accumulation stays f32 via preferred_element_type).
# Set to jnp.float32 for bit-closer-to-PyTorch numerics.
_MATMUL_DTYPE = jnp.bfloat16


# ---------------------------------------------------------------------------
# In-kernel helpers (traced into each kernel body).
# ---------------------------------------------------------------------------
def _conv_k3(x, w2d, patch_ref):
    """Conv1d(kernel_size=3, padding=1, bias=False) as a single MXU matmul.

    x:         (C, L) f32 value (one sample, channels x length)
    w2d:       (Cout, 3*C) matmul-dtype weights, column order [tap0*C .. tap2*C]
    patch_ref: (3*C, L) f32 VMEM scratch for the im2col patches
    returns    (Cout, L) f32
    """
    c, l = x.shape
    zcol = jnp.zeros((c, 1), jnp.float32)
    # im2col: rows [0:C] = x shifted right (tap k=0, zero at l=0),
    #         rows [C:2C] = x (tap k=1),
    #         rows [2C:3C] = x shifted left (tap k=2, zero at l=L-1).
    patch_ref[0:c, 0:1] = zcol
    patch_ref[0:c, 1:l] = x[:, 0:l - 1]
    patch_ref[c:2 * c, :] = x
    patch_ref[2 * c:3 * c, 0:l - 1] = x[:, 1:l]
    patch_ref[2 * c:3 * c, l - 1:l] = zcol
    patches = patch_ref[...].astype(w2d.dtype)
    return jnp.dot(w2d, patches, preferred_element_type=jnp.float32)


def _write_stats(acc, sum_ref, sumsq_ref):
    """Per-sample per-channel partial sum / sum-of-squares over L (for global BN stats)."""
    sum_ref[0] = jnp.sum(acc, axis=1, keepdims=True)
    sumsq_ref[0] = jnp.sum(acc * acc, axis=1, keepdims=True)


# ---------------------------------------------------------------------------
# Kernels.
# ---------------------------------------------------------------------------
def _conv1_stats_kernel(x_ref, w1_ref, sum_ref, sumsq_ref, patch1_ref):
    """Pass 1: conv1 on one sample -> BN1 partial statistics only (no activation write)."""
    acc1 = _conv_k3(x_ref[0], w1_ref[...], patch1_ref)
    _write_stats(acc1, sum_ref, sumsq_ref)


def _conv_bnrelu_conv_kernel(x_ref, w1_ref, scale1_ref, shift1_ref, w2_ref,
                             y2_ref, sum_ref, sumsq_ref, patch1_ref, patch2_ref):
    """Pass 2: recompute conv1, BN1+ReLU in VMEM, conv2 -> y2 + BN2 partial stats."""
    acc1 = _conv_k3(x_ref[0], w1_ref[...], patch1_ref)
    h = jnp.maximum(acc1 * scale1_ref[...] + shift1_ref[...], 0.0)   # (Cmid, L) f32
    acc2 = _conv_k3(h, w2_ref[...], patch2_ref)
    y2_ref[0] = acc2
    _write_stats(acc2, sum_ref, sumsq_ref)


def _bn_relu_kernel(y_ref, scale_ref, shift_ref, o_ref):
    """Pass 3: BN2 + ReLU epilogue (single-pass scale/shift form)."""
    o_ref[0] = jnp.maximum(y_ref[0] * scale_ref[...] + shift_ref[...], 0.0)


# ---------------------------------------------------------------------------
# Host-side wrapper.
# ---------------------------------------------------------------------------
def _bn_scale_shift(sum_part, sumsq_part, gamma, beta, count):
    """Reduce per-sample partials and fold BN into y = x*scale + shift (train-mode stats)."""
    s = jnp.sum(sum_part, axis=0)[:, 0]      # (C,)
    ss = jnp.sum(sumsq_part, axis=0)[:, 0]   # (C,)
    mean = s / count
    var = jnp.maximum(ss / count - mean * mean, 0.0)   # biased (train-mode) variance, f32
    scale = gamma.astype(jnp.float32) * jax.lax.rsqrt(var + _BN_EPS)
    shift = beta.astype(jnp.float32) - mean * scale
    return scale.reshape(-1, 1), shift.reshape(-1, 1)


def double_conv(x, params):
    """Forward pass of DoubleConv.  x: (N, C_in, L) in NCL layout, like the PyTorch module."""
    n, c_in, l = x.shape
    w1, w2 = params["w1"], params["w2"]
    c_mid, c_out = w1.shape[0], w2.shape[0]

    x = x.astype(jnp.float32)
    # nn.Conv1d weight (Cout, Cin, 3) -> (Cout, 3*Cin), columns ordered [tap, channel]
    # to match the im2col row order built in _conv_k3.
    w1_2d = jnp.transpose(w1, (0, 2, 1)).reshape(c_mid, 3 * c_in).astype(_MATMUL_DTYPE)
    w2_2d = jnp.transpose(w2, (0, 2, 1)).reshape(c_out, 3 * c_mid).astype(_MATMUL_DTYPE)

    cparams = pltpu.CompilerParams(
        dimension_semantics=("parallel",),          # shard the batch across TCs (v7x)
        vmem_limit_bytes=32 * 1024 * 1024,          # raise v5e's 16 MiB default
    )
    per_n3 = lambda i: (i, 0, 0)    # one batch sample per grid step
    whole2 = lambda i: (0, 0)       # small resident operand (weights / scale / shift)

    # ---- Pass 1: BN1 batch statistics (partials per sample, reduced below). ----
    sum1, sumsq1 = pl.pallas_call(
        _conv1_stats_kernel,
        grid=(n,),
        in_specs=[
            pl.BlockSpec((1, c_in, l), per_n3),
            pl.BlockSpec((c_mid, 3 * c_in), whole2),
        ],
        out_specs=(
            pl.BlockSpec((1, c_mid, 1), per_n3),
            pl.BlockSpec((1, c_mid, 1), per_n3),
        ),
        out_shape=(
            jax.ShapeDtypeStruct((n, c_mid, 1), jnp.float32),
            jax.ShapeDtypeStruct((n, c_mid, 1), jnp.float32),
        ),
        scratch_shapes=[pltpu.VMEM((3 * c_in, l), jnp.float32)],
        compiler_params=cparams,
    )(x, w1_2d)
    scale1, shift1 = _bn_scale_shift(sum1, sumsq1, params["gamma1"], params["beta1"], n * l)

    # ---- Pass 2: conv1 (recompute) -> BN1+ReLU (VMEM only) -> conv2 -> y2 + stats. ----
    y2, sum2, sumsq2 = pl.pallas_call(
        _conv_bnrelu_conv_kernel,
        grid=(n,),
        in_specs=[
            pl.BlockSpec((1, c_in, l), per_n3),
            pl.BlockSpec((c_mid, 3 * c_in), whole2),
            pl.BlockSpec((c_mid, 1), whole2),
            pl.BlockSpec((c_mid, 1), whole2),
            pl.BlockSpec((c_out, 3 * c_mid), whole2),
        ],
        out_specs=(
            pl.BlockSpec((1, c_out, l), per_n3),
            pl.BlockSpec((1, c_out, 1), per_n3),
            pl.BlockSpec((1, c_out, 1), per_n3),
        ),
        out_shape=(
            jax.ShapeDtypeStruct((n, c_out, l), jnp.float32),
            jax.ShapeDtypeStruct((n, c_out, 1), jnp.float32),
            jax.ShapeDtypeStruct((n, c_out, 1), jnp.float32),
        ),
        scratch_shapes=[
            pltpu.VMEM((3 * c_in, l), jnp.float32),
            pltpu.VMEM((3 * c_mid, l), jnp.float32),
        ],
        compiler_params=cparams,
    )(x, w1_2d, scale1, shift1, w2_2d)
    scale2, shift2 = _bn_scale_shift(sum2, sumsq2, params["gamma2"], params["beta2"], n * l)

    # ---- Pass 3: BN2 + ReLU. ----
    out = pl.pallas_call(
        _bn_relu_kernel,
        grid=(n,),
        in_specs=[
            pl.BlockSpec((1, c_out, l), per_n3),
            pl.BlockSpec((c_out, 1), whole2),
            pl.BlockSpec((c_out, 1), whole2),
        ],
        out_specs=pl.BlockSpec((1, c_out, l), per_n3),
        out_shape=jax.ShapeDtypeStruct((n, c_out, l), jnp.float32),
        compiler_params=cparams,
    )(y2, scale2, shift2)
    return out


def init_double_conv_params(key, in_channels, out_channels, mid_channels=None):
    if not mid_channels:
        mid_channels = out_channels
    k1, k2 = jax.random.split(key)
    # Conv1d weights: (Cout, Cin, 3), no bias.  BN: weight=1, bias=0 (PyTorch default init).
    w1 = jax.random.normal(k1, (mid_channels, in_channels, 3), jnp.float32) * 0.1
    w2 = jax.random.normal(k2, (out_channels, mid_channels, 3), jnp.float32) * 0.1
    return {
        "w1": w1,
        "gamma1": jnp.ones((mid_channels,), jnp.float32),
        "beta1": jnp.zeros((mid_channels,), jnp.float32),
        "w2": w2,
        "gamma2": jnp.ones((out_channels,), jnp.float32),
        "beta2": jnp.zeros((out_channels,), jnp.float32),
    }


if __name__ == "__main__":
    N, C_IN, C_OUT, L = 2, 4, 8, 16

    key = jax.random.PRNGKey(0)
    kx, kp = jax.random.split(key)
    x = jax.random.normal(kx, (N, C_IN, L), jnp.float32)   # NCL, like nn.Conv1d input
    params = init_double_conv_params(kp, C_IN, C_OUT)

    out = jax.jit(double_conv)(x, params)
    out = jax.block_until_ready(out)
    assert out.shape == (N, C_OUT, L)
    print("KERNEL_OK")
</pallas_src>

<mosaic_0001>
module attributes {stable_mosaic.version = 11 : i64} {
  func.func @_conv1_stats_kernel(%arg0: i32, %arg1: memref<1x4x16xf32, #tpu.memory_space<vmem>>, %arg2: memref<8x12xbf16, #tpu.memory_space<vmem>>, %arg3: memref<1x8x1xf32, #tpu.memory_space<vmem>>, %arg4: memref<1x8x1xf32, #tpu.memory_space<vmem>>, %arg5: memref<12x16xf32, #tpu.memory_space<vmem>>) attributes {dimension_semantics = [#tpu.dimension_semantics<parallel>], iteration_bounds = array<i64: 2>, scalar_prefetch = 0 : i64, scratch_operands = 1 : i64, tpu.core_type = #tpu.core_type<tc>, window_params = [{transform_indices = @transform_0, window_bounds = array<i64: 1, 4, 16>}, {pipeline_mode = #tpu.pipeline_mode<synchronous>, transform_indices = @transform_1, window_bounds = array<i64: 8, 12>}, {transform_indices = @transform_2, window_bounds = array<i64: 1, 8, 1>}, {transform_indices = @transform_3, window_bounds = array<i64: 1, 8, 1>}]} {
    %c0 = arith.constant 0 : index
    %c0_0 = arith.constant 0 : index
    %c0_1 = arith.constant 0 : index
    %0 = vector.load %arg1[%c0, %c0_0, %c0_1] : memref<1x4x16xf32, #tpu.memory_space<vmem>>, vector<1x4x16xf32>
    %1 = vector.shape_cast %0 : vector<1x4x16xf32> to vector<4x16xf32>
    %c0_2 = arith.constant 0 : index
    %c0_3 = arith.constant 0 : index
    %2 = vector.load %arg2[%c0_2, %c0_3] : memref<8x12xbf16, #tpu.memory_space<vmem>>, vector<8x12xbf16>
    %cst = arith.constant 0.000000e+00 : f32
    %3 = vector.broadcast %cst : f32 to vector<4x1xf32>
    %c0_4 = arith.constant 0 : index
    %c0_5 = arith.constant 0 : index
    %4 = vector.load %arg5[%c0_4, %c0_5] : memref<12x16xf32, #tpu.memory_space<vmem>>, vector<4x1xf32>
    tpu.vector_store %arg5[%c0_4, %c0_5], %3 {strides = array<i32>} : memref<12x16xf32, #tpu.memory_space<vmem>>, vector<4x1xf32>,
    %5 = vector.extract_strided_slice %1 {offsets = [0, 0], sizes = [4, 15], strides = [1, 1]} : vector<4x16xf32> to vector<4x15xf32>
    %c0_6 = arith.constant 0 : index
    %c1 = arith.constant 1 : index
    %6 = vector.load %arg5[%c0_6, %c1] : memref<12x16xf32, #tpu.memory_space<vmem>>, vector<4x15xf32>
    tpu.vector_store %arg5[%c0_6, %c1], %5 {strides = array<i32>} : memref<12x16xf32, #tpu.memory_space<vmem>>, vector<4x15xf32>,
    %c4 = arith.constant 4 : index
    %c0_7 = arith.constant 0 : index
    %7 = vector.load %arg5[%c4, %c0_7] : memref<12x16xf32, #tpu.memory_space<vmem>>, vector<4x16xf32>
    tpu.vector_store %arg5[%c4, %c0_7], %1 {strides = array<i32>} : memref<12x16xf32, #tpu.memory_space<vmem>>, vector<4x16xf32>,
    %8 = vector.extract_strided_slice %1 {offsets = [0, 1], sizes = [4, 15], strides = [1, 1]} : vector<4x16xf32> to vector<4x15xf32>
    %c8 = arith.constant 8 : index
    %c0_8 = arith.constant 0 : index
    %9 = vector.load %arg5[%c8, %c0_8] : memref<12x16xf32, #tpu.memory_space<vmem>>, vector<4x15xf32>
    tpu.vector_store %arg5[%c8, %c0_8], %8 {strides = array<i32>} : memref<12x16xf32, #tpu.memory_space<vmem>>, vector<4x15xf32>,
    %c8_9 = arith.constant 8 : index
    %c15 = arith.constant 15 : index
    %10 = vector.load %arg5[%c8_9, %c15] : memref<12x16xf32, #tpu.memory_space<vmem>>, vector<4x1xf32>
    tpu.vector_store %arg5[%c8_9, %c15], %3 {strides = array<i32>} : memref<12x16xf32, #tpu.memory_space<vmem>>, vector<4x1xf32>,
    %c0_10 = arith.constant 0 : index
    %c0_11 = arith.constant 0 : index
    %11 = vector.load %arg5[%c0_10, %c0_11] : memref<12x16xf32, #tpu.memory_space<vmem>>, vector<12x16xf32>
    %12 = arith.truncf %11 : vector<12x16xf32> to vector<12x16xbf16>
    %cst_12 = arith.constant dense<0.000000e+00> : vector<8x16xf32>
    %13 = tpu.matmul %2, %12, %cst_12 {dimension_numbers = #tpu.dot_dimension_numbers<[1], [0], [0], [1], [0, 0, 1, 1], [], []>} : vector<8x12xbf16>, vector<12x16xbf16>, vector<8x16xf32> -> vector<8x16xf32>
    %cst_13 = arith.constant dense<0.000000e+00> : vector<8xf32>
    %14 = vector.multi_reduction <add>, %13, %cst_13 [1] : vector<8x16xf32> to vector<8xf32>
    %15 = vector.shape_cast %14 : vector<8xf32> to vector<8x1xf32>
    %c0_14 = arith.constant 0 : index
    %c0_15 = arith.constant 0 : index
    %c0_16 = arith.constant 0 : index
    %16 = vector.load %arg3[%c0_14, %c0_15, %c0_16] : memref<1x8x1xf32, #tpu.memory_space<vmem>>, vector<1x8x1xf32>
    %17 = vector.shape_cast %16 : vector<1x8x1xf32> to vector<8x1xf32>
    %18 = vector.shape_cast %15 : vector<8x1xf32> to vector<1x8x1xf32>
    tpu.vector_store %arg3[%c0_14, %c0_15, %c0_16], %18 {strides = array<i32>} : memref<1x8x1xf32, #tpu.memory_space<vmem>>, vector<1x8x1xf32>,
    %19 = arith.mulf %13, %13 : vector<8x16xf32>
    %cst_17 = arith.constant dense<0.000000e+00> : vector<8xf32>
    %20 = vector.multi_reduction <add>, %19, %cst_17 [1] : vector<8x16xf32> to vector<8xf32>
    %21 = vector.shape_cast %20 : vector<8xf32> to vector<8x1xf32>
    %c0_18 = arith.constant 0 : index
    %c0_19 = arith.constant 0 : index
    %c0_20 = arith.constant 0 : index
    %22 = vector.load %arg4[%c0_18, %c0_19, %c0_20] : memref<1x8x1xf32, #tpu.memory_space<vmem>>, vector<1x8x1xf32>
    %23 = vector.shape_cast %22 : vector<1x8x1xf32> to vector<8x1xf32>
    %24 = vector.shape_cast %21 : vector<8x1xf32> to vector<1x8x1xf32>
    tpu.vector_store %arg4[%c0_18, %c0_19, %c0_20], %24 {strides = array<i32>} : memref<1x8x1xf32, #tpu.memory_space<vmem>>, vector<1x8x1xf32>,
    return
  }
  func.func @transform_0(%arg0: i32) -> (i32, i32, i32) {
    %c0_i32 = arith.constant 0 : i32
    %c0_i32_0 = arith.constant 0 : i32
    %c0_i32_1 = arith.constant 0 : i32
    return %arg0, %c0_i32, %c0_i32_0 : i32, i32, i32
  }
  func.func @transform_1(%arg0: i32) -> (i32, i32) {
    %c0_i32 = arith.constant 0 : i32
    %c0_i32_0 = arith.constant 0 : i32
    %c0_i32_1 = arith.constant 0 : i32
    return %c0_i32, %c0_i32_0 : i32, i32
  }
  func.func @transform_2(%arg0: i32) -> (i32, i32, i32) {
    %c0_i32 = arith.constant 0 : i32
    %c0_i32_0 = arith.constant 0 : i32
    %c0_i32_1 = arith.constant 0 : i32
    return %arg0, %c0_i32, %c0_i32_0 : i32, i32, i32
  }
  func.func @transform_3(%arg0: i32) -> (i32, i32, i32) {
    %c0_i32 = arith.constant 0 : i32
    %c0_i32_0 = arith.constant 0 : i32
    %c0_i32_1 = arith.constant 0 : i32
    return %arg0, %c0_i32, %c0_i32_0 : i32, i32, i32
  }
}

module attributes {stable_mosaic.version = 11 : i64} {
  func.func @_conv_bnrelu_conv_kernel(%arg0: i32, %arg1: memref<1x4x16xf32, #tpu.memory_space<vmem>>, %arg2: memref<8x12xbf16, #tpu.memory_space<vmem>>, %arg3: memref<8x1xf32, #tpu.memory_space<vmem>>, %arg4: memref<8x1xf32, #tpu.memory_space<vmem>>, %arg5: memref<8x24xbf16, #tpu.memory_space<vmem>>, %arg6: memref<1x8x16xf32, #tpu.memory_space<vmem>>, %arg7: memref<1x8x1xf32, #tpu.memory_space<vmem>>, %arg8: memref<1x8x1xf32, #tpu.memory_space<vmem>>, %arg9: memref<12x16xf32, #tpu.memory_space<vmem>>, %arg10: memref<24x16xf32, #tpu.memory_space<vmem>>) attributes {dimension_semantics = [#tpu.dimension_semantics<parallel>], iteration_bounds = array<i64: 2>, scalar_prefetch = 0 : i64, scratch_operands = 2 : i64, tpu.core_type = #tpu.core_type<tc>, window_params = [{transform_indices = @transform_0, window_bounds = array<i64: 1, 4, 16>}, {pipeline_mode = #tpu.pipeline_mode<synchronous>, transform_indices = @transform_1, window_bounds = array<i64: 8, 12>}, {pipeline_mode = #tpu.pipeline_mode<synchronous>, transform_indices = @transform_2, window_bounds = array<i64: 8, 1>}, {pipeline_mode = #tpu.pipeline_mode<synchronous>, transform_indices = @transform_3, window_bounds = array<i64: 8, 1>}, {pipeline_mode = #tpu.pipeline_mode<synchronous>, transform_indices = @transform_4, window_bounds = array<i64: 8, 24>}, {transform_indices = @transform_5, window_bounds = array<i64: 1, 8, 16>}, {transform_indices = @transform_6, window_bounds = array<i64: 1, 8, 1>}, {transform_indices = @transform_7, window_bounds = array<i64: 1, 8, 1>}]} {
    %c0 = arith.constant 0 : index
    %c0_0 = arith.constant 0 : index
    %c0_1 = arith.constant 0 : index
    %0 = vector.load %arg1[%c0, %c0_0, %c0_1] : memref<1x4x16xf32, #tpu.memory_space<vmem>>, vector<1x4x16xf32>
    %1 = vector.shape_cast %0 : vector<1x4x16xf32> to vector<4x16xf32>
    %c0_2 = arith.constant 0 : index
    %c0_3 = arith.constant 0 : index
    %2 = vector.load %arg2[%c0_2, %c0_3] : memref<8x12xbf16, #tpu.memory_space<vmem>>, vector<8x12xbf16>
    %cst = arith.constant 0.000000e+00 : f32
    %3 = vector.broadcast %cst : f32 to vector<4x1xf32>
    %c0_4 = arith.constant 0 : index
    %c0_5 = arith.constant 0 : index
    %4 = vector.load %arg9[%c0_4, %c0_5] : memref<12x16xf32, #tpu.memory_space<vmem>>, vector<4x1xf32>
    tpu.vector_store %arg9[%c0_4, %c0_5], %3 {strides = array<i32>} : memref<12x16xf32, #tpu.memory_space<vmem>>, vector<4x1xf32>,
    %5 = vector.extract_strided_slice %1 {offsets = [0, 0], sizes = [4, 15], strides = [1, 1]} : vector<4x16xf32> to vector<4x15xf32>
    %c0_6 = arith.constant 0 : index
    %c1 = arith.constant 1 : index
    %6 = vector.load %arg9[%c0_6, %c1] : memref<12x16xf32, #tpu.memory_space<vmem>>, vector<4x15xf32>
    tpu.vector_store %arg9[%c0_6, %c1], %5 {strides = array<i32>} : memref<12x16xf32, #tpu.memory_space<vmem>>, vector<4x15xf32>,
    %c4 = arith.constant 4 : index
    %c0_7 = arith.constant 0 : index
    %7 = vector.load %arg9[%c4, %c0_7] : memref<12x16xf32, #tpu.memory_space<vmem>>, vector<4x16xf32>
    tpu.vector_store %arg9[%c4, %c0_7], %1 {strides = array<i32>} : memref<12x16xf32, #tpu.memory_space<vmem>>, vector<4x16xf32>,
    %8 = vector.extract_strided_slice %1 {offsets = [0, 1], sizes = [4, 15], strides = [1, 1]} : vector<4x16xf32> to vector<4x15xf32>
    %c8 = arith.constant 8 : index
    %c0_8 = arith.constant 0 : index
    %9 = vector.load %arg9[%c8, %c0_8] : memref<12x16xf32, #tpu.memory_space<vmem>>, vector<4x15xf32>
    tpu.vector_store %arg9[%c8, %c0_8], %8 {strides = array<i32>} : memref<12x16xf32, #tpu.memory_space<vmem>>, vector<4x15xf32>,
    %c8_9 = arith.constant 8 : index
    %c15 = arith.constant 15 : index
    %10 = vector.load %arg9[%c8_9, %c15] : memref<12x16xf32, #tpu.memory_space<vmem>>, vector<4x1xf32>
    tpu.vector_store %arg9[%c8_9, %c15], %3 {strides = array<i32>} : memref<12x16xf32, #tpu.memory_space<vmem>>, vector<4x1xf32>,
    %c0_10 = arith.constant 0 : index
    %c0_11 = arith.constant 0 : index
    %11 = vector.load %arg9[%c0_10, %c0_11] : memref<12x16xf32, #tpu.memory_space<vmem>>, vector<12x16xf32>
    %12 = arith.truncf %11 : vector<12x16xf32> to vector<12x16xbf16>
    %cst_12 = arith.constant dense<0.000000e+00> : vector<8x16xf32>
    %13 = tpu.matmul %2, %12, %cst_12 {dimension_numbers = #tpu.dot_dimension_numbers<[1], [0], [0], [1], [0, 0, 1, 1], [], []>} : vector<8x12xbf16>, vector<12x16xbf16>, vector<8x16xf32> -> vector<8x16xf32>
    %c0_13 = arith.constant 0 : index
    %c0_14 = arith.constant 0 : index
    %14 = vector.load %arg3[%c0_13, %c0_14] : memref<8x1xf32, #tpu.memory_space<vmem>>, vector<8x1xf32>
    %15 = vector.broadcast %14 : vector<8x1xf32> to vector<8x16xf32>
    %16 = arith.mulf %13, %15 : vector<8x16xf32>
    %c0_15 = arith.constant 0 : index
    %c0_16 = arith.constant 0 : index
    %17 = vector.load %arg4[%c0_15, %c0_16] : memref<8x1xf32, #tpu.memory_space<vmem>>, vector<8x1xf32>
    %18 = vector.broadcast %17 : vector<8x1xf32> to vector<8x16xf32>
    %19 = arith.addf %16, %18 : vector<8x16xf32>
    %cst_17 = arith.constant 0.000000e+00 : f32
    %20 = vector.broadcast %cst_17 : f32 to vector<8x16xf32>
    %21 = arith.maximumf %19, %20 : vector<8x16xf32>
    %c0_18 = arith.constant 0 : index
    %c0_19 = arith.constant 0 : index
    %22 = vector.load %arg5[%c0_18, %c0_19] : memref<8x24xbf16, #tpu.memory_space<vmem>>, vector<8x24xbf16>
    %cst_20 = arith.constant 0.000000e+00 : f32
    %23 = vector.broadcast %cst_20 : f32 to vector<8x1xf32>
    %c0_21 = arith.constant 0 : index
    %c0_22 = arith.constant 0 : index
    %24 = vector.load %arg10[%c0_21, %c0_22] : memref<24x16xf32, #tpu.memory_space<vmem>>, vector<8x1xf32>
    tpu.vector_store %arg10[%c0_21, %c0_22], %23 {strides = array<i32>} : memref<24x16xf32, #tpu.memory_space<vmem>>, vector<8x1xf32>,
    %25 = vector.extract_strided_slice %21 {offsets = [0, 0], sizes = [8, 15], strides = [1, 1]} : vector<8x16xf32> to vector<8x15xf32>
    %c0_23 = arith.constant 0 : index
    %c1_24 = arith.constant 1 : index
    %26 = vector.load %arg10[%c0_23, %c1_24] : memref<24x16xf32, #tpu.memory_space<vmem>>, vector<8x15xf32>
    tpu.vector_store %arg10[%c0_23, %c1_24], %25 {strides = array<i32>} : memref<24x16xf32, #tpu.memory_space<vmem>>, vector<8x15xf32>,
    %c8_25 = arith.constant 8 : index
    %c0_26 = arith.constant 0 : index
    %27 = vector.load %arg10[%c8_25, %c0_26] : memref<24x16xf32, #tpu.memory_space<vmem>>, vector<8x16xf32>
    tpu.vector_store %arg10[%c8_25, %c0_26], %21 {strides = array<i32>} : memref<24x16xf32, #tpu.memory_space<vmem>>, vector<8x16xf32>,
    %28 = vector.extract_strided_slice %21 {offsets = [0, 1], sizes = [8, 15], strides = [1, 1]} : vector<8x16xf32> to vector<8x15xf32>
    %c16 = arith.constant 16 : index
    %c0_27 = arith.constant 0 : index
    %29 = vector.load %arg10[%c16, %c0_27] : memref<24x16xf32, #tpu.memory_space<vmem>>, vector<8x15xf32>
    tpu.vector_store %arg10[%c16, %c0_27], %28 {strides = array<i32>} : memref<24x16xf32, #tpu.memory_space<vmem>>, vector<8x15xf32>,
    %c16_28 = arith.constant 16 : index
    %c15_29 = arith.constant 15 : index
    %30 = vector.load %arg10[%c16_28, %c15_29] : memref<24x16xf32, #tpu.memory_space<vmem>>, vector<8x1xf32>
    tpu.vector_store %arg10[%c16_28, %c15_29], %23 {strides = array<i32>} : memref<24x16xf32, #tpu.memory_space<vmem>>, vector<8x1xf32>,
    %c0_30 = arith.constant 0 : index
    %c0_31 = arith.constant 0 : index
    %31 = vector.load %arg10[%c0_30, %c0_31] : memref<24x16xf32, #tpu.memory_space<vmem>>, vector<24x16xf32>
    %32 = arith.truncf %31 : vector<24x16xf32> to vector<24x16xbf16>
    %cst_32 = arith.constant dense<0.000000e+00> : vector<8x16xf32>
    %33 = tpu.matmul %22, %32, %cst_32 {dimension_numbers = #tpu.dot_dimension_numbers<[1], [0], [0], [1], [0, 0, 1, 1], [], []>} : vector<8x24xbf16>, vector<24x16xbf16>, vector<8x16xf32> -> vector<8x16xf32>
    %c0_33 = arith.constant 0 : index
    %c0_34 = arith.constant 0 : index
    %c0_35 = arith.constant 0 : index
    %34 = vector.load %arg6[%c0_33, %c0_34, %c0_35] : memref<1x8x16xf32, #tpu.memory_space<vmem>>, vector<1x8x16xf32>
    %35 = vector.shape_cast %34 : vector<1x8x16xf32> to vector<8x16xf32>
    %36 = vector.shape_cast %33 : vector<8x16xf32> to vector<1x8x16xf32>
    tpu.vector_store %arg6[%c0_33, %c0_34, %c0_35], %36 {strides = array<i32>} : memref<1x8x16xf32, #tpu.memory_space<vmem>>, vector<1x8x16xf32>,
    %cst_36 = arith.constant dense<0.000000e+00> : vector<8xf32>
    %37 = vector.multi_reduction <add>, %33, %cst_36 [1] : vector<8x16xf32> to vector<8xf32>
    %38 = vector.shape_cast %37 : vector<8xf32> to vector<8x1xf32>
    %c0_37 = arith.constant 0 : index
    %c0_38 = arith.constant 0 : index
    %c0_39 = arith.constant 0 : index
    %39 = vector.load %arg7[%c0_37, %c0_38, %c0_39] : memref<1x8x1xf32, #tpu.memory_space<vmem>>, vector<1x8x1xf32>
    %40 = vector.shape_cast %39 : vector<1x8x1xf32> to vector<8x1xf32>
    %41 = vector.shape_cast %38 : vector<8x1xf32> to vector<1x8x1xf32>
    tpu.vector_store %arg7[%c0_37, %c0_38, %c0_39], %41 {strides = array<i32>} : memref<1x8x1xf32, #tpu.memory_space<vmem>>, vector<1x8x1xf32>,
    %42 = arith.mulf %33, %33 : vector<8x16xf32>
    %cst_40 = arith.constant dense<0.000000e+00> : vector<8xf32>
    %43 = vector.multi_reduction <add>, %42, %cst_40 [1] : vector<8x16xf32> to vector<8xf32>
    %44 = vector.shape_cast %43 : vector<8xf32> to vector<8x1xf32>
    %c0_41 = arith.constant 0 : index
    %c0_42 = arith.constant 0 : index
    %c0_43 = arith.constant 0 : index
    %45 = vector.load %arg8[%c0_41, %c0_42, %c0_43] : memref<1x8x1xf32, #tpu.memory_space<vmem>>, vector<1x8x1xf32>
    %46 = vector.shape_cast %45 : vector<1x8x1xf32> to vector<8x1xf32>
    %47 = vector.shape_cast %44 : vector<8x1xf32> to vector<1x8x1xf32>
    tpu.vector_store %arg8[%c0_41, %c0_42, %c0_43], %47 {strides = array<i32>} : memref<1x8x1xf32, #tpu.memory_space<vmem>>, vector<1x8x1xf32>,
    return
  }
  func.func @transform_0(%arg0: i32) -> (i32, i32, i32) {
    %c0_i32 = arith.constant 0 : i32
    %c0_i32_0 = arith.constant 0 : i32
    %c0_i32_1 = arith.constant 0 : i32
    return %arg0, %c0_i32, %c0_i32_0 : i32, i32, i32
  }
  func.func @transform_1(%arg0: i32) -> (i32, i32) {
    %c0_i32 = arith.constant 0 : i32
    %c0_i32_0 = arith.constant 0 : i32
    %c0_i32_1 = arith.constant 0 : i32
    return %c0_i32, %c0_i32_0 : i32, i32
  }
  func.func @transform_2(%arg0: i32) -> (i32, i32) {
    %c0_i32 = arith.constant 0 : i32
    %c0_i32_0 = arith.constant 0 : i32
    %c0_i32_1 = arith.constant 0 : i32
    return %c0_i32, %c0_i32_0 : i32, i32
  }
  func.func @transform_3(%arg0: i32) -> (i32, i32) {
    %c0_i32 = arith.constant 0 : i32
    %c0_i32_0 = arith.constant 0 : i32
    %c0_i32_1 = arith.constant 0 : i32
    return %c0_i32, %c0_i32_0 : i32, i32
  }
  func.func @transform_4(%arg0: i32) -> (i32, i32) {
    %c0_i32 = arith.constant 0 : i32
    %c0_i32_0 = arith.constant 0 : i32
    %c0_i32_1 = arith.constant 0 : i32
    return %c0_i32, %c0_i32_0 : i32, i32
  }
  func.func @transform_5(%arg0: i32) -> (i32, i32, i32) {
    %c0_i32 = arith.constant 0 : i32
    %c0_i32_0 = arith.constant 0 : i32
    %c0_i32_1 = arith.constant 0 : i32
    return %arg0, %c0_i32, %c0_i32_0 : i32, i32, i32
  }
  func.func @transform_6(%arg0: i32) -> (i32, i32, i32) {
    %c0_i32 = arith.constant 0 : i32
    %c0_i32_0 = arith.constant 0 : i32
    %c0_i32_1 = arith.constant 0 : i32
    return %arg0, %c0_i32, %c0_i32_0 : i32, i32, i32
  }
  func.func @transform_7(%arg0: i32) -> (i32, i32, i32) {
    %c0_i32 = arith.constant 0 : i32
    %c0_i32_0 = arith.constant 0 : i32
    %c0_i32_1 = arith.constant 0 : i32
    return %arg0, %c0_i32, %c0_i32_0 : i32, i32, i32
  }
}

module attributes {stable_mosaic.version = 11 : i64} {
  func.func @_bn_relu_kernel(%arg0: i32, %arg1: memref<1x8x16xf32, #tpu.memory_space<vmem>>, %arg2: memref<8x1xf32, #tpu.memory_space<vmem>>, %arg3: memref<8x1xf32, #tpu.memory_space<vmem>>, %arg4: memref<1x8x16xf32, #tpu.memory_space<vmem>>) attributes {dimension_semantics = [#tpu.dimension_semantics<parallel>], iteration_bounds = array<i64: 2>, scalar_prefetch = 0 : i64, scratch_operands = 0 : i64, tpu.core_type = #tpu.core_type<tc>, window_params = [{transform_indices = @transform_0, window_bounds = array<i64: 1, 8, 16>}, {pipeline_mode = #tpu.pipeline_mode<synchronous>, transform_indices = @transform_1, window_bounds = array<i64: 8, 1>}, {pipeline_mode = #tpu.pipeline_mode<synchronous>, transform_indices = @transform_2, window_bounds = array<i64: 8, 1>}, {transform_indices = @transform_3, window_bounds = array<i64: 1, 8, 16>}]} {
    %c0 = arith.constant 0 : index
    %c0_0 = arith.constant 0 : index
    %c0_1 = arith.constant 0 : index
    %0 = vector.load %arg1[%c0, %c0_0, %c0_1] : memref<1x8x16xf32, #tpu.memory_space<vmem>>, vector<1x8x16xf32>
    %1 = vector.shape_cast %0 : vector<1x8x16xf32> to vector<8x16xf32>
    %c0_2 = arith.constant 0 : index
    %c0_3 = arith.constant 0 : index
    %2 = vector.load %arg2[%c0_2, %c0_3] : memref<8x1xf32, #tpu.memory_space<vmem>>, vector<8x1xf32>
    %3 = vector.broadcast %2 : vector<8x1xf32> to vector<8x16xf32>
    %4 = arith.mulf %1, %3 : vector<8x16xf32>
    %c0_4 = arith.constant 0 : index
    %c0_5 = arith.constant 0 : index
    %5 = vector.load %arg3[%c0_4, %c0_5] : memref<8x1xf32, #tpu.memory_space<vmem>>, vector<8x1xf32>
    %6 = vector.broadcast %5 : vector<8x1xf32> to vector<8x16xf32>
    %7 = arith.addf %4, %6 : vector<8x16xf32>
    %cst = arith.constant 0.000000e+00 : f32
    %8 = vector.broadcast %cst : f32 to vector<8x16xf32>
    %9 = arith.maximumf %7, %8 : vector<8x16xf32>
    %c0_6 = arith.constant 0 : index
    %c0_7 = arith.constant 0 : index
    %c0_8 = arith.constant 0 : index
    %10 = vector.load %arg4[%c0_6, %c0_7, %c0_8] : memref<1x8x16xf32, #tpu.memory_space<vmem>>, vector<1x8x16xf32>
    %11 = vector.shape_cast %10 : vector<1x8x16xf32> to vector<8x16xf32>
    %12 = vector.shape_cast %9 : vector<8x16xf32> to vector<1x8x16xf32>
    tpu.vector_store %arg4[%c0_6, %c0_7, %c0_8], %12 {strides = array<i32>} : memref<1x8x16xf32, #tpu.memory_space<vmem>>, vector<1x8x16xf32>,
    return
  }
  func.func @transform_0(%arg0: i32) -> (i32, i32, i32) {
    %c0_i32 = arith.constant 0 : i32
    %c0_i32_0 = arith.constant 0 : i32
    %c0_i32_1 = arith.constant 0 : i32
    return %arg0, %c0_i32, %c0_i32_0 : i32, i32, i32
  }
  func.func @transform_1(%arg0: i32) -> (i32, i32) {
    %c0_i32 = arith.constant 0 : i32
    %c0_i32_0 = arith.constant 0 : i32
    %c0_i32_1 = arith.constant 0 : i32
    return %c0_i32, %c0_i32_0 : i32, i32
  }
  func.func @transform_2(%arg0: i32) -> (i32, i32) {
    %c0_i32 = arith.constant 0 : i32
    %c0_i32_0 = arith.constant 0 : i32
    %c0_i32_1 = arith.constant 0 : i32
    return %c0_i32, %c0_i32_0 : i32, i32
  }
  func.func @transform_3(%arg0: i32) -> (i32, i32, i32) {
    %c0_i32 = arith.constant 0 : i32
    %c0_i32_0 = arith.constant 0 : i32
    %c0_i32_1 = arith.constant 0 : i32
    return %arg0, %c0_i32, %c0_i32_0 : i32, i32, i32
  }
}

</mosaic_0001>

<llo_original>
// kernel: double_conv.3
$region0: #{double_conv.3}
  #allocation0 [shape = 'u32[]', space=smem, size = 0x4, offset = 0x4, fixed_abs, tag = 'smem constant byte address 0x4 - core index']
  #allocation1 [shape = 'u32[144,128]{1,0:T(1,128)}', space=vmem, size = 0x12000, scoped, tag = 'internal scratch']
  #allocation2 [shape = 'f32[12,16]{1,0:T(8,128)}', space=vmem, size = 0x2000, scoped, tag = 'scratch operand']
  %s0 = inlined_call_operand.vmem [shape: f32[2,4,16], index: 0, kind: input, shape index: {}]
  %s1 = inlined_call_operand.vmem [shape: bf16[8,12], index: 1, kind: input, shape index: {}]
  %s2 = inlined_call_operand.vmem [shape: f32[2,8,1], index: 2, kind: output, shape index: {0}]
  %s3 = inlined_call_operand.vmem [shape: f32[2,8,1], index: 3, kind: output, shape index: {1}]
  %4 = xla_tuple %s2, %s3
  %s5 = sld [smem:[#allocation0]]
  $region49: #{double_conv.3} parent=0
    _
  %s7 = ssub.s32 1, %s5
  %s8 = scalar_select 0, %s7, %s5
  loop: start=0, step=1, limit=4
  $region2: #{double_conv.3} parent=0 // loop_pre_header
    _
  $region3: #{double_conv.3} parent=0 // loop_header
    %s10 = sphi 0, %s14
    %p11 = scmp.ge.s32.totalorder %s10, 4
    %s20 = sphi 0, %s22
    %s23 = sphi 0, %s20
    %s24 = sphi 0, %s23
    %s40 = sphi 0, %s24
    %s44 = sphi 0, %s44
    %s46 = sphi 0, %s44
    %s47 = sphi 0, %s46
    %s61 = sphi 0, %s47
    %s67 = sphi 0, %s69
    %s70 = sphi 0, %s67
    %s71 = sphi 0, %s70
    %s87 = sphi 0, %s71
    %s93 = sphi 0, %s95
    %s96 = sphi 0, %s93
    %s97 = sphi 0, %s96
    %s113 = sphi 0, %s97
  $region4: #{double_conv.3} parent=0 // loop_header_branch
    %13 = sbr.rel (%p11) target = $region8
  $region5: #{double_conv.3} parent=0 // loop_body
    %s15 = ssub.s32 %s10, 1
    %s16 = ssub.s32 %s10, 2
    %s17 = sadd.s32 %s10, 1
    %s18 = ssub.s32 %s10, %s17
    %p19 = scmp.eq.s32.totalorder %s18, 0
    %s21 = sadd.s32 %s20, 1
    %s22 = scalar_select %p19, %s20, %s21
    %p25 = pneg %p19
    %p26 = scmp.eq.s32.totalorder %s10, 1
    %p27 = por %p25, %p26
    %p28 = scmp.ne.s32.totalorder %s20, %s23
    %p29 = scmp.eq.s32.totalorder %s10, 0
    %p30 = por %p28, %p29
    %p31 = scmp.ne.s32.totalorder %s20, %s23
    %p32 = scmp.eq.s32.totalorder %s15, 1
    %p33 = por %p31, %p32
    %p34 = scmp.ne.s32.totalorder %s23, %s24
    %p35 = scmp.eq.s32.totalorder %s15, 0
    %p36 = por %p34, %p35
    %p37 = scmp.ne.s32.totalorder %s23, %s24
    %p38 = scmp.eq.s32.totalorder %s16, 1
    %p39 = por %p37, %p38
    %p41 = scmp.ne.s32.totalorder %s24, %s40
    %p42 = scmp.eq.s32.totalorder %s16, 0
    %p43 = por %p41, %p42
    %s45 = sadd.s32 %s44, 1
    %p48 = scmp.eq.s32.totalorder %s10, 1
    %p49 = scmp.ne.s32.totalorder %s44, %s46
    %p50 = scmp.eq.s32.totalorder %s10, 0
    %p51 = por %p49, %p50
    %p52 = scmp.ne.s32.totalorder %s44, %s46
    %p53 = scmp.eq.s32.totalorder %s15, 1
    %p54 = por %p52, %p53
    %p55 = scmp.ne.s32.totalorder %s46, %s47
    %p56 = scmp.eq.s32.totalorder %s15, 0
    %p57 = por %p55, %p56
    %p58 = scmp.ne.s32.totalorder %s46, %s47
    %p59 = scmp.eq.s32.totalorder %s16, 1
    %p60 = por %p58, %p59
    %p62 = scmp.ne.s32.totalorder %s47, %s61
    %p63 = scmp.eq.s32.totalorder %s16, 0
    %p64 = por %p62, %p63
    %s65 = ssub.s32 %s10, %s17
    %p66 = scmp.eq.s32.totalorder %s65, 0
    %s68 = sadd.s32 %s67, 1
    %s69 = scalar_select %p66, %s67, %s68
    %p72 = pneg %p66
    %p73 = scmp.eq.s32.totalorder %s10, 1
    %p74 = por %p72, %p73
    %p75 = scmp.ne.s32.totalorder %s67, %s70
    %p76 = scmp.eq.s32.totalorder %s10, 0
    %p77 = por %p75, %p76
    %p78 = scmp.ne.s32.totalorder %s67, %s70
    %p79 = scmp.eq.s32.totalorder %s15, 1
    %p80 = por %p78, %p79
    %p81 = scmp.ne.s32.totalorder %s70, %s71
    %p82 = scmp.eq.s32.totalorder %s15, 0
    %p83 = por %p81, %p82
    %p84 = scmp.ne.s32.totalorder %s70, %s71
    %p85 = scmp.eq.s32.totalorder %s16, 1
    %p86 = por %p84, %p85
    %p88 = scmp.ne.s32.totalorder %s71, %s87
    %p89 = scmp.eq.s32.totalorder %s16, 0
    %p90 = por %p88, %p89
    %s91 = ssub.s32 %s10, %s17
    %p92 = scmp.eq.s32.totalorder %s91, 0
    %s94 = sadd.s32 %s93, 1
    %s95 = scalar_select %p92, %s93, %s94
    %p98 = pneg %p92
    %p99 = scmp.eq.s32.totalorder %s10, 1
    %p100 = por %p98, %p99
    %p101 = scmp.ne.s32.totalorder %s93, %s96
    %p102 = scmp.eq.s32.totalorder %s10, 0
    %p103 = por %p101, %p102
    %p104 = scmp.ne.s32.totalorder %s93, %s96
    %p105 = scmp.eq.s32.totalorder %s15, 1
    %p106 = por %p104, %p105
    %p107 = scmp.ne.s32.totalorder %s96, %s97
    %p108 = scmp.eq.s32.totalorder %s15, 0
    %p109 = por %p107, %p108
    %p110 = scmp.ne.s32.totalorder %s96, %s97
    %p111 = scmp.eq.s32.totalorder %s16, 1
    %p112 = por %p110, %p111
    %p114 = scmp.ne.s32.totalorder %s97, %s113
    %p115 = scmp.eq.s32.totalorder %s16, 0
    %p116 = por %p114, %p115
    %p117 = scmp.le.s32.totalorder 1, %s10
    %p118 = scmp.lt.s32.totalorder %s10, 3
    %p119 = pnand %p117, %p118
    %p120 = pneg %p119
    // Predicated region
    $region9: #{double_conv.3} parent=5 // pred_check
      _
    $region10: #{double_conv.3} parent=5 // pred_check_branch
      %122 = sbr.rel (%p119) target = $region12
    $region11: #{double_conv.3} parent=5 // pred_region
      %s123 = ssub.s32 %s10, 1
      // Predicated region
      $region13: #{double_conv.3} parent=11 // pred_check
        %p124 = pneg %p57
      $region14: #{double_conv.3} parent=11 // pred_check_branch
        %126 = sbr.rel (%p124) target = $region16
      $region15: #{double_conv.3} parent=11 // pred_region
        _
      $region16: #{double_conv.3} parent=11 // pred_fallthru
        _
    $region12: #{double_conv.3} parent=5 // pred_fallthru
      _
    %p127 = scmp.lt.s32.totalorder %s10, 2
    // Predicated region
    $region17: #{double_conv.3} parent=5 // pred_check
      %p128 = pneg %p127
    $region18: #{double_conv.3} parent=5 // pred_check_branch
      %130 = sbr.rel (%p128) target = $region20
    $region19: #{double_conv.3} parent=5 // pred_region
      // Predicated region
      $region21: #{double_conv.3} parent=19 // pred_check
        %p131 = pneg %p30
      $region22: #{double_conv.3} parent=19 // pred_check_branch
        %133 = sbr.rel (%p131) target = $region24
      $region23: #{double_conv.3} parent=19 // pred_region
        %p134 = scmp.lt.s32.totalorder %s10, 1
        %s135 = scalar_select %p134, %s10, 1
        %s136 = smul.addr %s135, 4
        %s137 = scalar_lea.vmem %s0, %s136
      $region24: #{double_conv.3} parent=19 // pred_fallthru
        _
    $region20: #{double_conv.3} parent=5 // pred_fallthru
      _
    %p138 = scmp.le.s32.totalorder 1, %s10
    %p139 = scmp.lt.s32.totalorder %s10, 3
    %p140 = pnand %p138, %p139
    %p141 = pneg %p140
    // Predicated region
    $region25: #{double_conv.3} parent=5 // pred_check
      _
    $region26: #{double_conv.3} parent=5 // pred_check_branch
      %143 = sbr.rel (%p140) target = $region28
    $region27: #{double_conv.3} parent=5 // pred_region
      %s144 = ssub.s32 %s10, 1
      %p145 = scmp.lt.s32.totalorder %s15, 1
      %s146 = scalar_select %p145, %s15, 1
      %s147 = smul.addr %s146, 4
      %s148 = scalar_lea.vmem %s0, %s147
      %p149 = pneg %p36
      %p150 = pneg %p33
      %p151 = pneg %p57
      %p152 = pneg %p54
      %p153 = pneg %p83
      %p154 = pneg %p80
      %p155 = scmp.lt.s32.totalorder %s15, 1
      %s156 = scalar_select %p155, %s15, 1
      %s157 = smul.addr %s156, 8
      %s158 = scalar_lea.vmem %s2, %s157
      %p159 = pneg %p109
      %p160 = pneg %p106
      %p161 = scmp.lt.s32.totalorder %s15, 1
      %s162 = scalar_select %p161, %s15, 1
      %s163 = smul.addr %s162, 8
      %s164 = scalar_lea.vmem %s3, %s163
      %p165 = scmp.lt.s32.totalorder %s15, 1
      %s166 = scalar_select %p165, %s15, 1
      %s167 = smul.addr %s166, 4
      %s168 = scalar_lea.vmem %s0, %s167
      %p169 = scmp.lt.s32.totalorder %s15, 1
      %s170 = scalar_select %p169, %s15, 1
      %s171 = smul.addr %s170, 8
      %s172 = scalar_lea.vmem %s2, %s171
      %p173 = scmp.lt.s32.totalorder %s15, 1
      %s174 = scalar_select %p173, %s15, 1
      %s175 = smul.addr %s174, 8
      %s176 = scalar_lea.vmem %s3, %s175
      %v178 = vld [vmem:[%s168] sm:$0xf]
      %v179 = vld [vmem:[%s1] sm:$0xf]
      %vm180 = vcmask 3072
      %181 = vst.msk [vmem:[#allocation2] sm:$0xf] %vm180, 0.0
      %183 = vrot.lane.b32.xlu0 %v178, 1
      %v184 = vpop.permute.xlu0 %183
      %vm186 = vcmask 125960
      %187 = vst.msk [vmem:[#allocation2] sm:$0xf] %vm186, %v184
      %vm188 = vcmask 125952
      %189 = vst.msk [vmem:[#allocation2 + $0x4] sm:$0xf] %vm188, %v178
      %190 = vrot.lane.b32.xlu0 %v178, 127
      %v191 = vpop.permute.xlu0 %190
      %vm193 = vcmask 117760
      %194 = vst.msk [vmem:[#allocation2 + $0x8] sm:$0xf] %vm193, %v191
      %vm195 = vcmask 126072
      %196 = vst.msk [vmem:[#allocation2 + $0x8] sm:$0xf] %vm195, 0.0
      %v197 = vld [vmem:[#allocation2] sm:$0xff]
      %v198 = vld [vmem:[#allocation2 + $0x8] sm:$0xf]
      %v199 = vpack.c.bf16 %v198, %v197
      %vm200 = vcmask 97280
      %v202 = vsel %vm200, %v179, 0
      %vm204 = vcmask 1045504
      %v206 = vsel %vm204, %v199, 0
      %208 = vmatprep.subr.bf16.mxu0 0
      %209 = vmatpush1.bf16.msra.mxu0 %v206
      %210 = vmatprep.subr.bf16.mxu0 0
      %211 = vmatpush1.bf16.msra.mxu0 0
      %212 = vmatprep.subr.bf16.mxu0 0
      %213 = vmatpush1.bf16.msra.mxu0 0
      %214 = vmatprep.subr.bf16.mxu0 0
      %215 = vmatpush1.bf16.msra.mxu0 0
      %216 = vmatprep.subr.bf16.mxu0 0
      %217 = vmatpush1.bf16.msra.mxu0 0
      %218 = vmatprep.subr.bf16.mxu0 0
      %219 = vmatpush1.bf16.msra.mxu0 0
      %220 = vmatprep.subr.bf16.mxu0 0
      %221 = vmatpush1.bf16.msra.mxu0 0
      %222 = vmatprep.subr.bf16.mxu0 0
      %223 = vmatpush1.bf16.msra.mxu0 0
      %224 = vmatprep.subr.bf16.mxu0 0
      %225 = vmatpush1.bf16.msra.mxu0 0
      %226 = vmatprep.subr.bf16.mxu0 0
      %227 = vmatpush1.bf16.msra.mxu0 0
      %228 = vmatprep.subr.bf16.mxu0 0
      %229 = vmatpush1.bf16.msra.mxu0 0
      %230 = vmatprep.subr.bf16.mxu0 0
      %231 = vmatpush1.bf16.msra.mxu0 0
      %232 = vmatprep.subr.bf16.mxu0 0
      %233 = vmatpush1.bf16.msra.mxu0 0
      %234 = vmatprep.subr.bf16.mxu0 0
      %235 = vmatpush1.bf16.msra.mxu0 0
      %236 = vmatprep.subr.bf16.mxu0 0
      %237 = vmatpush1.bf16.msra.mxu0 0
      %238 = vmatprep.subr.bf16.mxu0 0
      %239 = vmatpush1.bf16.msra.mxu0 0
      %240 = vmatprep.mubr.bf16.mxu0 0
      %241 = vmatmul.mubr.bf16.gmra.mrb[0].mxu0 %v202
      %v242 = vpop.f32.mrb[0].mxu0
      %v243 = vadd.f32 0.0, %v242
      %v244 = vpop.f32.mrb[0].mxu0
      %v245 = vpop.f32.mrb[0].mxu0
      %v246 = vpop.f32.mrb[0].mxu0
      %247 = vdwg.mxu0
      %vm248 = vcmask 130048
      %v249 = vsel %vm248, %v243, 0.0
      %250 = vadd.xlane.f32.xlu0 %v249
      %v251 = vpop.xlane.xlu0 %250
      %vm252 = vcmask 7168
      %253 = vst.msk [vmem:[%s172] sm:$0xff] %vm252, %v251
      %v254 = vmul.f32 %v243, %v243
      %v255 = vsel %vm248, %v254, 0.0
      %256 = vadd.xlane.f32.xlu0 %v255
      %v257 = vpop.xlane.xlu0 %256
      %258 = vst.msk [vmem:[%s176] sm:$0xff] %vm252, %v257
      %p259 = scmp.lt.s32.totalorder %s15, 1
      %s260 = scalar_select %p259, %s15, 1
      %s261 = smul.addr %s260, 8
      %s262 = scalar_lea.vmem %s2, %s261
      %p263 = scmp.lt.s32.totalorder %s15, 1
      %s264 = scalar_select %p263, %s15, 1
      %s265 = smul.addr %s264, 8
      %s266 = scalar_lea.vmem %s3, %s265
      // Predicated region
      $region29: #{double_conv.3} parent=27 // pred_check
        %p267 = pneg %p80
      $region30: #{double_conv.3} parent=27 // pred_check_branch
        %269 = sbr.rel (%p267) target = $region32
      $region31: #{double_conv.3} parent=27 // pred_region
        _
      $region32: #{double_conv.3} parent=27 // pred_fallthru
        _
      // Predicated region
      $region33: #{double_conv.3} parent=27 // pred_check
        %p270 = pneg %p106
      $region34: #{double_conv.3} parent=27 // pred_check_branch
        %272 = sbr.rel (%p270) target = $region36
      $region35: #{double_conv.3} parent=27 // pred_region
        _
      $region36: #{double_conv.3} parent=27 // pred_fallthru
        _
    $region28: #{double_conv.3} parent=5 // pred_fallthru
      _
    %p273 = scmp.le.s32.totalorder 2, %s10
    // Predicated region
    $region37: #{double_conv.3} parent=5 // pred_check
      %p274 = pneg %p273
    $region38: #{double_conv.3} parent=5 // pred_check_branch
      %276 = sbr.rel (%p274) target = $region40
    $region39: #{double_conv.3} parent=5 // pred_region
      %s277 = ssub.s32 %s10, 2
      // Predicated region
      $region41: #{double_conv.3} parent=39 // pred_check
        %p278 = pneg %p86
      $region42: #{double_conv.3} parent=39 // pred_check_branch
        %280 = sbr.rel (%p278) target = $region44
      $region43: #{double_conv.3} parent=39 // pred_region
        %p281 = scmp.lt.s32.totalorder %s16, 1
        %s282 = scalar_select %p281, %s16, 1
        %s283 = smul.addr %s282, 8
        %s284 = scalar_lea.vmem %s2, %s283
      $region44: #{double_conv.3} parent=39 // pred_fallthru
        _
      // Predicated region
      $region45: #{double_conv.3} parent=39 // pred_check
        %p285 = pneg %p112
      $region46: #{double_conv.3} parent=39 // pred_check_branch
        %287 = sbr.rel (%p285) target = $region48
      $region47: #{double_conv.3} parent=39 // pred_region
        %p288 = scmp.lt.s32.totalorder %s16, 1
        %s289 = scalar_select %p288, %s16, 1
        %s290 = smul.addr %s289, 8
        %s291 = scalar_lea.vmem %s3, %s290
      $region48: #{double_conv.3} parent=39 // pred_fallthru
        _
    $region40: #{double_conv.3} parent=5 // pred_fallthru
      _
  $region6: #{double_conv.3} parent=0 // loop_footer
    %s14 = sadd.s32 1, %s10
  $region7: #{double_conv.3} parent=0 // loop_footer_branch
    %9 = sbr.rel target = $region3
  $region8: #{double_conv.3} parent=0 // loop_exit
    _

// kernel: double_conv.5
$region0: #{double_conv.5}
  #allocation0 [shape = 'u32[]', space=smem, size = 0x4, offset = 0x4, fixed_abs, tag = 'smem constant byte address 0x4 - core index']
  #allocation1 [shape = 'u32[144,128]{1,0:T(1,128)}', space=vmem, size = 0x12000, scoped, tag = 'internal scratch']
  %s0 = inlined_call_operand.vmem [shape: f32[2,8,16], index: 0, kind: input, shape index: {}]
  %s1 = inlined_call_operand.vmem [shape: f32[8,1], index: 1, kind: input, shape index: {}]
  %s2 = inlined_call_operand.vmem [shape: f32[8,1], index: 2, kind: input, shape index: {}]
  %s3 = inlined_call_operand.hbm [shape: f32[2,8,16], index: 3, kind: output, shape index: {}]
  %s4 = sld [smem:[#allocation0]]
  $region45: #{double_conv.5} parent=0
    _
  %s6 = ssub.s32 1, %s4
  %s7 = scalar_select 0, %s6, %s4
  $region1: #{double_conv.5} parent=0
    #allocation2 [shape = 'u8[8192]{0}', space=vmem, size = 0x2000, scoped, tag = 'output window, operand 0']
    #allocation3 [shape = 's32[2]{0}', space=sflag, size = 0x8, scoped, tag = 'scoped memory for double_conv.5']
    %8 = vsyncpa [#allocation3], 0
    %s9 = scalar_lea.sflag [#allocation3], 1
    %10 = vsyncpa %s9, 0
    loop: start=0, step=1, limit=4
    $region2: #{double_conv.5} parent=1 // loop_pre_header
      _
    $region3: #{double_conv.5} parent=1 // loop_header
      %s12 = sphi 0, %s16
      %p13 = scmp.ge.s32.totalorder %s12, 4
      %s22 = sphi 0, %s24
      %s25 = sphi 0, %s22
      %s26 = sphi 0, %s25
      %s42 = sphi 0, %s26
      %s46 = sphi 0, %s46
      %s48 = sphi 0, %s46
      %s49 = sphi 0, %s48
      %s63 = sphi 0, %s49
      %s67 = sphi 0, %s67
      %s69 = sphi 0, %s67
      %s70 = sphi 0, %s69
      %s84 = sphi 0, %s70
      %s90 = sphi 0, %s92
      %s93 = sphi 0, %s90
      %s94 = sphi 0, %s93
      %s110 = sphi 0, %s94
    $region4: #{double_conv.5} parent=1 // loop_header_branch
      %15 = sbr.rel (%p13) target = $region8
    $region5: #{double_conv.5} parent=1 // loop_body
      %s17 = ssub.s32 %s12, 1
      %s18 = ssub.s32 %s12, 2
      %s19 = sadd.s32 %s12, 1
      %s20 = ssub.s32 %s12, %s19
      %p21 = scmp.eq.s32.totalorder %s20, 0
      %s23 = sadd.s32 %s22, 1
      %s24 = scalar_select %p21, %s22, %s23
      %p27 = pneg %p21
      %p28 = scmp.eq.s32.totalorder %s12, 1
      %p29 = por %p27, %p28
      %p30 = scmp.ne.s32.totalorder %s22, %s25
      %p31 = scmp.eq.s32.totalorder %s12, 0
      %p32 = por %p30, %p31
      %p33 = scmp.ne.s32.totalorder %s22, %s25
      %p34 = scmp.eq.s32.totalorder %s17, 1
      %p35 = por %p33, %p34
      %p36 = scmp.ne.s32.totalorder %s25, %s26
      %p37 = scmp.eq.s32.totalorder %s17, 0
      %p38 = por %p36, %p37
      %p39 = scmp.ne.s32.totalorder %s25, %s26
      %p40 = scmp.eq.s32.totalorder %s18, 1
      %p41 = por %p39, %p40
      %p43 = scmp.ne.s32.totalorder %s26, %s42
      %p44 = scmp.eq.s32.totalorder %s18, 0
      %p45 = por %p43, %p44
      %s47 = sadd.s32 %s46, 1
      %p50 = scmp.eq.s32.totalorder %s12, 1
      %p51 = scmp.ne.s32.totalorder %s46, %s48
      %p52 = scmp.eq.s32.totalorder %s12, 0
      %p53 = por %p51, %p52
      %p54 = scmp.ne.s32.totalorder %s46, %s48
      %p55 = scmp.eq.s32.totalorder %s17, 1
      %p56 = por %p54, %p55
      %p57 = scmp.ne.s32.totalorder %s48, %s49
      %p58 = scmp.eq.s32.totalorder %s17, 0
      %p59 = por %p57, %p58
      %p60 = scmp.ne.s32.totalorder %s48, %s49
      %p61 = scmp.eq.s32.totalorder %s18, 1
      %p62 = por %p60, %p61
      %p64 = scmp.ne.s32.totalorder %s49, %s63
      %p65 = scmp.eq.s32.totalorder %s18, 0
      %p66 = por %p64, %p65
      %s68 = sadd.s32 %s67, 1
      %p71 = scmp.eq.s32.totalorder %s12, 1
      %p72 = scmp.ne.s32.totalorder %s67, %s69
      %p73 = scmp.eq.s32.totalorder %s12, 0
      %p74 = por %p72, %p73
      %p75 = scmp.ne.s32.totalorder %s67, %s69
      %p76 = scmp.eq.s32.totalorder %s17, 1
      %p77 = por %p75, %p76
      %p78 = scmp.ne.s32.totalorder %s69, %s70
      %p79 = scmp.eq.s32.totalorder %s17, 0
      %p80 = por %p78, %p79
      %p81 = scmp.ne.s32.totalorder %s69, %s70
      %p82 = scmp.eq.s32.totalorder %s18, 1
      %p83 = por %p81, %p82
      %p85 = scmp.ne.s32.totalorder %s70, %s84
      %p86 = scmp.eq.s32.totalorder %s18, 0
      %p87 = por %p85, %p86
      %s88 = ssub.s32 %s12, %s19
      %p89 = scmp.eq.s32.totalorder %s88, 0
      %s91 = sadd.s32 %s90, 1
      %s92 = scalar_select %p89, %s90, %s91
      %p95 = pneg %p89
      %p96 = scmp.eq.s32.totalorder %s12, 1
      %p97 = por %p95, %p96
      %p98 = scmp.ne.s32.totalorder %s90, %s93
      %p99 = scmp.eq.s32.totalorder %s12, 0
      %p100 = por %p98, %p99
      %p101 = scmp.ne.s32.totalorder %s90, %s93
      %p102 = scmp.eq.s32.totalorder %s17, 1
      %p103 = por %p101, %p102
      %p104 = scmp.ne.s32.totalorder %s93, %s94
      %p105 = scmp.eq.s32.totalorder %s17, 0
      %p106 = por %p104, %p105
      %p107 = scmp.ne.s32.totalorder %s93, %s94
      %p108 = scmp.eq.s32.totalorder %s18, 1
      %p109 = por %p107, %p108
      %p111 = scmp.ne.s32.totalorder %s94, %s110
      %p112 = scmp.eq.s32.totalorder %s18, 0
      %p113 = por %p111, %p112
      %p114 = scmp.le.s32.totalorder 1, %s12
      %p115 = scmp.lt.s32.totalorder %s12, 3
      %p116 = pnand %p114, %p115
      %p117 = pneg %p116
      // Predicated region
      $region9: #{double_conv.5} parent=5 // pred_check
        _
      $region10: #{double_conv.5} parent=5 // pred_check_branch
        %119 = sbr.rel (%p116) target = $region12
      $region11: #{double_conv.5} parent=5 // pred_region
        %s120 = ssub.s32 %s12, 1
        // Predicated region
        $region13: #{double_conv.5} parent=11 // pred_check
          %p121 = pneg %p59
        $region14: #{double_conv.5} parent=11 // pred_check_branch
          %123 = sbr.rel (%p121) target = $region16
        $region15: #{double_conv.5} parent=11 // pred_region
          _
        $region16: #{double_conv.5} parent=11 // pred_fallthru
          _
        // Predicated region
        $region17: #{double_conv.5} parent=11 // pred_check
          %p124 = pneg %p80
        $region18: #{double_conv.5} parent=11 // pred_check_branch
          %126 = sbr.rel (%p124) target = $region20
        $region19: #{double_conv.5} parent=11 // pred_region
          _
        $region20: #{double_conv.5} parent=11 // pred_fallthru
          _
      $region12: #{double_conv.5} parent=5 // pred_fallthru
        _
      %p127 = scmp.lt.s32.totalorder %s12, 2
      // Predicated region
      $region21: #{double_conv.5} parent=5 // pred_check
        %p128 = pneg %p127
      $region22: #{double_conv.5} parent=5 // pred_check_branch
        %130 = sbr.rel (%p128) target = $region24
      $region23: #{double_conv.5} parent=5 // pred_region
        // Predicated region
        $region25: #{double_conv.5} parent=23 // pred_check
          %p131 = pneg %p32
        $region26: #{double_conv.5} parent=23 // pred_check_branch
          %133 = sbr.rel (%p131) target = $region28
        $region27: #{double_conv.5} parent=23 // pred_region
          %p134 = scmp.lt.s32.totalorder %s12, 1
          %s135 = scalar_select %p134, %s12, 1
          %s136 = smul.addr %s135, 8
          %s137 = scalar_lea.vmem %s0, %s136
        $region28: #{double_conv.5} parent=23 // pred_fallthru
          _
      $region24: #{double_conv.5} parent=5 // pred_fallthru
        _
      %p138 = scmp.le.s32.totalorder 1, %s12
      %p139 = scmp.lt.s32.totalorder %s12, 3
      %p140 = pnand %p138, %p139
      %p141 = pneg %p140
      // Predicated region
      $region29: #{double_conv.5} parent=5 // pred_check
        _
      $region30: #{double_conv.5} parent=5 // pred_check_branch
        %143 = sbr.rel (%p140) target = $region32
      $region31: #{double_conv.5} parent=5 // pred_region
        %s144 = ssub.s32 %s12, 1
        %p145 = scmp.lt.s32.totalorder %s17, 1
        %s146 = scalar_select %p145, %s17, 1
        %s147 = smul.addr %s146, 8
        %s148 = scalar_lea.vmem %s0, %s147
        %p149 = pneg %p38
        %p150 = pneg %p35
        %p151 = pneg %p59
        %p152 = pneg %p56
        %p153 = pneg %p80
        %p154 = pneg %p77
        %p155 = pneg %p106
        %p156 = pneg %p103
        %s157 = sand.u32 %s93, 1
        %s158 = scalar_lea.sflag [#allocation3], %s157
        %s159 = sand.u32 %s93, 1
        %s160 = smul.addr %s159, 8
        %s161 = scalar_lea.vmem [#allocation2], %s160
        %p162 = scmp.lt.s32.totalorder %s17, 1
        %s163 = scalar_select %p162, %s17, 1
        %s164 = smul.addr %s163, 8
        %s165 = scalar_lea.vmem %s0, %s164
        %v166 = vld [vmem:[%s165] sm:$0xff]
        %v167 = vld [vmem:[%s1] sm:$0xff]
        %169 = vset.pattern.permute.xlu0 0
        %170 = vperm.xlu0 %169, %v167
        %v171 = vpop.permute.xlu0 %170
        %v173 = vmul.f32 %v166, %v171
        %v174 = vld [vmem:[%s2] sm:$0xff]
        %176 = vset.pattern.permute.xlu0 0
        %177 = vperm.xlu0 %176, %v174
        %v178 = vpop.permute.xlu0 %177
        %v180 = vadd.f32 %v173, %v178
        %v181 = vmax.f32 %v180, 0.0
        %vm182 = vcmask 130048
        %183 = vst.msk [vmem:[%s161] sm:$0xff] %vm182, %v181
        %s184 = sand.u32 %s93, 1
        %s185 = scalar_lea.sflag [#allocation3], %s184
        %s186 = sand.u32 %s93, 1
        %s187 = smul.addr %s186, 8
        %s188 = scalar_lea.vmem [#allocation2], %s187
        // Predicated region
        $region33: #{double_conv.5} parent=31 // pred_check
          %p189 = pneg %p103
        $region34: #{double_conv.5} parent=31 // pred_check_branch
          %191 = sbr.rel (%p189) target = $region36
        $region35: #{double_conv.5} parent=31 // pred_region
          %s193 = ssub.s32 128, 128
          %194 = vsyncadd %s185, %s193
          %s195 = smul.addr %s17, 128
          %s196 = scalar_lea.hbm %s3, %s195
          %s198 = sshll.u32 %s188, 4
          %s199 = int_to_ptr.vmem [resolvable:$true] %s198
          %201 = dma.vmem_to_hbm [thread:$0]  %s199, 128, %s196, %s185
        $region36: #{double_conv.5} parent=31 // pred_fallthru
          _
      $region32: #{double_conv.5} parent=5 // pred_fallthru
        _
      %p202 = scmp.le.s32.totalorder 2, %s12
      // Predicated region
      $region37: #{double_conv.5} parent=5 // pred_check
        %p203 = pneg %p202
      $region38: #{double_conv.5} parent=5 // pred_check_branch
        %205 = sbr.rel (%p203) target = $region40
      $region39: #{double_conv.5} parent=5 // pred_region
        %s206 = ssub.s32 %s12, 2
        // Predicated region
        $region41: #{double_conv.5} parent=39 // pred_check
          %p207 = pneg %p109
        $region42: #{double_conv.5} parent=39 // pred_check_branch
          %209 = sbr.rel (%p207) target = $region44
        $region43: #{double_conv.5} parent=39 // pred_region
          %s210 = sand.u32 %s94, 1
          %s211 = scalar_lea.sflag [#allocation3], %s210
          %s212 = sand.u32 %s94, 1
          %s213 = smul.addr %s212, 8
          %s214 = scalar_lea.vmem [#allocation2], %s213
          %215 = dma.done %s211, 128
        $region44: #{double_conv.5} parent=39 // pred_fallthru
          _
      $region40: #{double_conv.5} parent=5 // pred_fallthru
        _
    $region6: #{double_conv.5} parent=1 // loop_footer
      %s16 = sadd.s32 1, %s12
    $region7: #{double_conv.5} parent=1 // loop_footer_branch
      %11 = sbr.rel target = $region3
    $region8: #{double_conv.5} parent=1 // loop_exit
      _
    %216 = vsyncpa [#allocation3], 1
    %s217 = scalar_lea.sflag [#allocation3], 1
    %218 = vsyncpa %s217, 1

// kernel: double_conv.4
$region0: #{double_conv.4}
  #allocation0 [shape = 'u32[]', space=smem, size = 0x4, offset = 0x4, fixed_abs, tag = 'smem constant byte address 0x4 - core index']
  #allocation1 [shape = 'u32[144,128]{1,0:T(1,128)}', space=vmem, size = 0x12000, scoped, tag = 'internal scratch']
  #allocation2 [shape = 'f32[12,16]{1,0:T(8,128)}', space=vmem, size = 0x2000, scoped, tag = 'scratch operand']
  #allocation3 [shape = 'f32[24,16]{1,0:T(8,128)}', space=vmem, size = 0x3000, scoped, tag = 'scratch operand']
  %s0 = inlined_call_operand.vmem [shape: f32[2,4,16], index: 0, kind: input, shape index: {}]
  %s1 = inlined_call_operand.vmem [shape: bf16[8,12], index: 1, kind: input, shape index: {}]
  %s2 = inlined_call_operand.vmem [shape: f32[8,1], index: 2, kind: input, shape index: {}]
  %s3 = inlined_call_operand.vmem [shape: f32[8,1], index: 3, kind: input, shape index: {}]
  %s4 = inlined_call_operand.vmem [shape: bf16[8,24], index: 4, kind: input, shape index: {}]
  %s5 = inlined_call_operand.vmem [shape: f32[2,8,16], index: 5, kind: output, shape index: {0}]
  %s6 = inlined_call_operand.vmem [shape: f32[2,8,1], index: 6, kind: output, shape index: {1}]
  %s7 = inlined_call_operand.vmem [shape: f32[2,8,1], index: 7, kind: output, shape index: {2}]
  %8 = xla_tuple %s5, %s6, %s7
  %s9 = sld [smem:[#allocation0]]
  $region69: #{double_conv.4} parent=0
    _
  %s11 = ssub.s32 1, %s9
  %s12 = scalar_select 0, %s11, %s9
  loop: start=0, step=1, limit=4
  $region2: #{double_conv.4} parent=0 // loop_pre_header
    _
  $region3: #{double_conv.4} parent=0 // loop_header
    %s14 = sphi 0, %s18
    %p15 = scmp.ge.s32.totalorder %s14, 4
    %s24 = sphi 0, %s26
    %s27 = sphi 0, %s24
    %s28 = sphi 0, %s27
    %s44 = sphi 0, %s28
    %s48 = sphi 0, %s48
    %s50 = sphi 0, %s48
    %s51 = sphi 0, %s50
    %s65 = sphi 0, %s51
    %s69 = sphi 0, %s69
    %s71 = sphi 0, %s69
    %s72 = sphi 0, %s71
    %s86 = sphi 0, %s72
    %s90 = sphi 0, %s90
    %s92 = sphi 0, %s90
    %s93 = sphi 0, %s92
    %s107 = sphi 0, %s93
    %s111 = sphi 0, %s111
    %s113 = sphi 0, %s111
    %s114 = sphi 0, %s113
    %s128 = sphi 0, %s114
    %s134 = sphi 0, %s136
    %s137 = sphi 0, %s134
    %s138 = sphi 0, %s137
    %s154 = sphi 0, %s138
    %s160 = sphi 0, %s162
    %s163 = sphi 0, %s160
    %s164 = sphi 0, %s163
    %s180 = sphi 0, %s164
    %s186 = sphi 0, %s188
    %s189 = sphi 0, %s186
    %s190 = sphi 0, %s189
    %s206 = sphi 0, %s190
  $region4: #{double_conv.4} parent=0 // loop_header_branch
    %17 = sbr.rel (%p15) target = $region8
  $region5: #{double_conv.4} parent=0 // loop_body
    %s19 = ssub.s32 %s14, 1
    %s20 = ssub.s32 %s14, 2
    %s21 = sadd.s32 %s14, 1
    %s22 = ssub.s32 %s14, %s21
    %p23 = scmp.eq.s32.totalorder %s22, 0
    %s25 = sadd.s32 %s24, 1
    %s26 = scalar_select %p23, %s24, %s25
    %p29 = pneg %p23
    %p30 = scmp.eq.s32.totalorder %s14, 1
    %p31 = por %p29, %p30
    %p32 = scmp.ne.s32.totalorder %s24, %s27
    %p33 = scmp.eq.s32.totalorder %s14, 0
    %p34 = por %p32, %p33
    %p35 = scmp.ne.s32.totalorder %s24, %s27
    %p36 = scmp.eq.s32.totalorder %s19, 1
    %p37 = por %p35, %p36
    %p38 = scmp.ne.s32.totalorder %s27, %s28
    %p39 = scmp.eq.s32.totalorder %s19, 0
    %p40 = por %p38, %p39
    %p41 = scmp.ne.s32.totalorder %s27, %s28
    %p42 = scmp.eq.s32.totalorder %s20, 1
    %p43 = por %p41, %p42
    %p45 = scmp.ne.s32.totalorder %s28, %s44
    %p46 = scmp.eq.s32.totalorder %s20, 0
    %p47 = por %p45, %p46
    %s49 = sadd.s32 %s48, 1
    %p52 = scmp.eq.s32.totalorder %s14, 1
    %p53 = scmp.ne.s32.totalorder %s48, %s50
    %p54 = scmp.eq.s32.totalorder %s14, 0
    %p55 = por %p53, %p54
    %p56 = scmp.ne.s32.totalorder %s48, %s50
    %p57 = scmp.eq.s32.totalorder %s19, 1
    %p58 = por %p56, %p57
    %p59 = scmp.ne.s32.totalorder %s50, %s51
    %p60 = scmp.eq.s32.totalorder %s19, 0
    %p61 = por %p59, %p60
    %p62 = scmp.ne.s32.totalorder %s50, %s51
    %p63 = scmp.eq.s32.totalorder %s20, 1
    %p64 = por %p62, %p63
    %p66 = scmp.ne.s32.totalorder %s51, %s65
    %p67 = scmp.eq.s32.totalorder %s20, 0
    %p68 = por %p66, %p67
    %s70 = sadd.s32 %s69, 1
    %p73 = scmp.eq.s32.totalorder %s14, 1
    %p74 = scmp.ne.s32.totalorder %s69, %s71
    %p75 = scmp.eq.s32.totalorder %s14, 0
    %p76 = por %p74, %p75
    %p77 = scmp.ne.s32.totalorder %s69, %s71
    %p78 = scmp.eq.s32.totalorder %s19, 1
    %p79 = por %p77, %p78
    %p80 = scmp.ne.s32.totalorder %s71, %s72
    %p81 = scmp.eq.s32.totalorder %s19, 0
    %p82 = por %p80, %p81
    %p83 = scmp.ne.s32.totalorder %s71, %s72
    %p84 = scmp.eq.s32.totalorder %s20, 1
    %p85 = por %p83, %p84
    %p87 = scmp.ne.s32.totalorder %s72, %s86
    %p88 = scmp.eq.s32.totalorder %s20, 0
    %p89 = por %p87, %p88
    %s91 = sadd.s32 %s90, 1
    %p94 = scmp.eq.s32.totalorder %s14, 1
    %p95 = scmp.ne.s32.totalorder %s90, %s92
    %p96 = scmp.eq.s32.totalorder %s14, 0
    %p97 = por %p95, %p96
    %p98 = scmp.ne.s32.totalorder %s90, %s92
    %p99 = scmp.eq.s32.totalorder %s19, 1
    %p100 = por %p98, %p99
    %p101 = scmp.ne.s32.totalorder %s92, %s93
    %p102 = scmp.eq.s32.totalorder %s19, 0
    %p103 = por %p101, %p102
    %p104 = scmp.ne.s32.totalorder %s92, %s93
    %p105 = scmp.eq.s32.totalorder %s20, 1
    %p106 = por %p104, %p105
    %p108 = scmp.ne.s32.totalorder %s93, %s107
    %p109 = scmp.eq.s32.totalorder %s20, 0
    %p110 = por %p108, %p109
    %s112 = sadd.s32 %s111, 1
    %p115 = scmp.eq.s32.totalorder %s14, 1
    %p116 = scmp.ne.s32.totalorder %s111, %s113
    %p117 = scmp.eq.s32.totalorder %s14, 0
    %p118 = por %p116, %p117
    %p119 = scmp.ne.s32.totalorder %s111, %s113
    %p120 = scmp.eq.s32.totalorder %s19, 1
    %p121 = por %p119, %p120
    %p122 = scmp.ne.s32.totalorder %s113, %s114
    %p123 = scmp.eq.s32.totalorder %s19, 0
    %p124 = por %p122, %p123
    %p125 = scmp.ne.s32.totalorder %s113, %s114
    %p126 = scmp.eq.s32.totalorder %s20, 1
    %p127 = por %p125, %p126
    %p129 = scmp.ne.s32.totalorder %s114, %s128
    %p130 = scmp.eq.s32.totalorder %s20, 0
    %p131 = por %p129, %p130
    %s132 = ssub.s32 %s14, %s21
    %p133 = scmp.eq.s32.totalorder %s132, 0
    %s135 = sadd.s32 %s134, 1
    %s136 = scalar_select %p133, %s134, %s135
    %p139 = pneg %p133
    %p140 = scmp.eq.s32.totalorder %s14, 1
    %p141 = por %p139, %p140
    %p142 = scmp.ne.s32.totalorder %s134, %s137
    %p143 = scmp.eq.s32.totalorder %s14, 0
    %p144 = por %p142, %p143
    %p145 = scmp.ne.s32.totalorder %s134, %s137
    %p146 = scmp.eq.s32.totalorder %s19, 1
    %p147 = por %p145, %p146
    %p148 = scmp.ne.s32.totalorder %s137, %s138
    %p149 = scmp.eq.s32.totalorder %s19, 0
    %p150 = por %p148, %p149
    %p151 = scmp.ne.s32.totalorder %s137, %s138
    %p152 = scmp.eq.s32.totalorder %s20, 1
    %p153 = por %p151, %p152
    %p155 = scmp.ne.s32.totalorder %s138, %s154
    %p156 = scmp.eq.s32.totalorder %s20, 0
    %p157 = por %p155, %p156
    %s158 = ssub.s32 %s14, %s21
    %p159 = scmp.eq.s32.totalorder %s158, 0
    %s161 = sadd.s32 %s160, 1
    %s162 = scalar_select %p159, %s160, %s161
    %p165 = pneg %p159
    %p166 = scmp.eq.s32.totalorder %s14, 1
    %p167 = por %p165, %p166
    %p168 = scmp.ne.s32.totalorder %s160, %s163
    %p169 = scmp.eq.s32.totalorder %s14, 0
    %p170 = por %p168, %p169
    %p171 = scmp.ne.s32.totalorder %s160, %s163
    %p172 = scmp.eq.s32.totalorder %s19, 1
    %p173 = por %p171, %p172
    %p174 = scmp.ne.s32.totalorder %s163, %s164
    %p175 = scmp.eq.s32.totalorder %s19, 0
    %p176 = por %p174, %p175
    %p177 = scmp.ne.s32.totalorder %s163, %s164
    %p178 = scmp.eq.s32.totalorder %s20, 1
    %p179 = por %p177, %p178
    %p181 = scmp.ne.s32.totalorder %s164, %s180
    %p182 = scmp.eq.s32.totalorder %s20, 0
    %p183 = por %p181, %p182
    %s184 = ssub.s32 %s14, %s21
    %p185 = scmp.eq.s32.totalorder %s184, 0
    %s187 = sadd.s32 %s186, 1
    %s188 = scalar_select %p185, %s186, %s187
    %p191 = pneg %p185
    %p192 = scmp.eq.s32.totalorder %s14, 1
    %p193 = por %p191, %p192
    %p194 = scmp.ne.s32.totalorder %s186, %s189
    %p195 = scmp.eq.s32.totalorder %s14, 0
    %p196 = por %p194, %p195
    %p197 = scmp.ne.s32.totalorder %s186, %s189
    %p198 = scmp.eq.s32.totalorder %s19, 1
    %p199 = por %p197, %p198
    %p200 = scmp.ne.s32.totalorder %s189, %s190
    %p201 = scmp.eq.s32.totalorder %s19, 0
    %p202 = por %p200, %p201
    %p203 = scmp.ne.s32.totalorder %s189, %s190
    %p204 = scmp.eq.s32.totalorder %s20, 1
    %p205 = por %p203, %p204
    %p207 = scmp.ne.s32.totalorder %s190, %s206
    %p208 = scmp.eq.s32.totalorder %s20, 0
    %p209 = por %p207, %p208
    %p210 = scmp.le.s32.totalorder 1, %s14
    %p211 = scmp.lt.s32.totalorder %s14, 3
    %p212 = pnand %p210, %p211
    %p213 = pneg %p212
    // Predicated region
    $region9: #{double_conv.4} parent=5 // pred_check
      _
    $region10: #{double_conv.4} parent=5 // pred_check_branch
      %215 = sbr.rel (%p212) target = $region12
    $region11: #{double_conv.4} parent=5 // pred_region
      %s216 = ssub.s32 %s14, 1
      // Predicated region
      $region13: #{double_conv.4} parent=11 // pred_check
        %p217 = pneg %p61
      $region14: #{double_conv.4} parent=11 // pred_check_branch
        %219 = sbr.rel (%p217) target = $region16
      $region15: #{double_conv.4} parent=11 // pred_region
        _
      $region16: #{double_conv.4} parent=11 // pred_fallthru
        _
      // Predicated region
      $region17: #{double_conv.4} parent=11 // pred_check
        %p220 = pneg %p82
      $region18: #{double_conv.4} parent=11 // pred_check_branch
        %222 = sbr.rel (%p220) target = $region20
      $region19: #{double_conv.4} parent=11 // pred_region
        _
      $region20: #{double_conv.4} parent=11 // pred_fallthru
        _
      // Predicated region
      $region21: #{double_conv.4} parent=11 // pred_check
        %p223 = pneg %p103
      $region22: #{double_conv.4} parent=11 // pred_check_branch
        %225 = sbr.rel (%p223) target = $region24
      $region23: #{double_conv.4} parent=11 // pred_region
        _
      $region24: #{double_conv.4} parent=11 // pred_fallthru
        _
      // Predicated region
      $region25: #{double_conv.4} parent=11 // pred_check
        %p226 = pneg %p124
      $region26: #{double_conv.4} parent=11 // pred_check_branch
        %228 = sbr.rel (%p226) target = $region28
      $region27: #{double_conv.4} parent=11 // pred_region
        _
      $region28: #{double_conv.4} parent=11 // pred_fallthru
        _
    $region12: #{double_conv.4} parent=5 // pred_fallthru
      _
    %p229 = scmp.lt.s32.totalorder %s14, 2
    // Predicated region
    $region29: #{double_conv.4} parent=5 // pred_check
      %p230 = pneg %p229
    $region30: #{double_conv.4} parent=5 // pred_check_branch
      %232 = sbr.rel (%p230) target = $region32
    $region31: #{double_conv.4} parent=5 // pred_region
      // Predicated region
      $region33: #{double_conv.4} parent=31 // pred_check
        %p233 = pneg %p34
      $region34: #{double_conv.4} parent=31 // pred_check_branch
        %235 = sbr.rel (%p233) target = $region36
      $region35: #{double_conv.4} parent=31 // pred_region
        %p236 = scmp.lt.s32.totalorder %s14, 1
        %s237 = scalar_select %p236, %s14, 1
        %s238 = smul.addr %s237, 4
        %s239 = scalar_lea.vmem %s0, %s238
      $region36: #{double_conv.4} parent=31 // pred_fallthru
        _
    $region32: #{double_conv.4} parent=5 // pred_fallthru
      _
    %p240 = scmp.le.s32.totalorder 1, %s14
    %p241 = scmp.lt.s32.totalorder %s14, 3
    %p242 = pnand %p240, %p241
    %p243 = pneg %p242
    // Predicated region
    $region37: #{double_conv.4} parent=5 // pred_check
      _
    $region38: #{double_conv.4} parent=5 // pred_check_branch
      %245 = sbr.rel (%p242) target = $region40
    $region39: #{double_conv.4} parent=5 // pred_region
      %s246 = ssub.s32 %s14, 1
      %p247 = scmp.lt.s32.totalorder %s19, 1
      %s248 = scalar_select %p247, %s19, 1
      %s249 = smul.addr %s248, 4
      %s250 = scalar_lea.vmem %s0, %s249
      %p251 = pneg %p40
      %p252 = pneg %p37
      %p253 = pneg %p61
      %p254 = pneg %p58
      %p255 = pneg %p82
      %p256 = pneg %p79
      %p257 = pneg %p103
      %p258 = pneg %p100
      %p259 = pneg %p124
      %p260 = pneg %p121
      %p261 = pneg %p150
      %p262 = pneg %p147
      %p263 = scmp.lt.s32.totalorder %s19, 1
      %s264 = scalar_select %p263, %s19, 1
      %s265 = smul.addr %s264, 8
      %s266 = scalar_lea.vmem %s5, %s265
      %p267 = pneg %p176
      %p268 = pneg %p173
      %p269 = scmp.lt.s32.totalorder %s19, 1
      %s270 = scalar_select %p269, %s19, 1
      %s271 = smul.addr %s270, 8
      %s272 = scalar_lea.vmem %s6, %s271
      %p273 = pneg %p202
      %p274 = pneg %p199
      %p275 = scmp.lt.s32.totalorder %s19, 1
      %s276 = scalar_select %p275, %s19, 1
      %s277 = smul.addr %s276, 8
      %s278 = scalar_lea.vmem %s7, %s277
      %p279 = scmp.lt.s32.totalorder %s19, 1
      %s280 = scalar_select %p279, %s19, 1
      %s281 = smul.addr %s280, 4
      %s282 = scalar_lea.vmem %s0, %s281
      %p283 = scmp.lt.s32.totalorder %s19, 1
      %s284 = scalar_select %p283, %s19, 1
      %s285 = smul.addr %s284, 8
      %s286 = scalar_lea.vmem %s5, %s285
      %p287 = scmp.lt.s32.totalorder %s19, 1
      %s288 = scalar_select %p287, %s19, 1
      %s289 = smul.addr %s288, 8
      %s290 = scalar_lea.vmem %s6, %s289
      %p291 = scmp.lt.s32.totalorder %s19, 1
      %s292 = scalar_select %p291, %s19, 1
      %s293 = smul.addr %s292, 8
      %s294 = scalar_lea.vmem %s7, %s293
      %v296 = vld [vmem:[%s282] sm:$0xf]
      %v297 = vld [vmem:[%s1] sm:$0xf]
      %vm298 = vcmask 3072
      %299 = vst.msk [vmem:[#allocation2] sm:$0xf] %vm298, 0.0
      %301 = vrot.lane.b32.xlu0 %v296, 1
      %v302 = vpop.permute.xlu0 %301
      %vm304 = vcmask 125960
      %305 = vst.msk [vmem:[#allocation2] sm:$0xf] %vm304, %v302
      %vm306 = vcmask 125952
      %307 = vst.msk [vmem:[#allocation2 + $0x4] sm:$0xf] %vm306, %v296
      %308 = vrot.lane.b32.xlu0 %v296, 127
      %v309 = vpop.permute.xlu0 %308
      %vm311 = vcmask 117760
      %312 = vst.msk [vmem:[#allocation2 + $0x8] sm:$0xf] %vm311, %v309
      %vm313 = vcmask 126072
      %314 = vst.msk [vmem:[#allocation2 + $0x8] sm:$0xf] %vm313, 0.0
      %v315 = vld [vmem:[#allocation2] sm:$0xff]
      %v316 = vld [vmem:[#allocation2 + $0x8] sm:$0xf]
      %v317 = vpack.c.bf16 %v316, %v315
      %vm318 = vcmask 97280
      %v320 = vsel %vm318, %v297, 0
      %vm322 = vcmask 1045504
      %v324 = vsel %vm322, %v317, 0
      %326 = vmatprep.subr.bf16.mxu0 0
      %327 = vmatpush1.bf16.msra.mxu0 %v324
      %328 = vmatprep.subr.bf16.mxu0 0
      %329 = vmatpush1.bf16.msra.mxu0 0
      %330 = vmatprep.subr.bf16.mxu0 0
      %331 = vmatpush1.bf16.msra.mxu0 0
      %332 = vmatprep.subr.bf16.mxu0 0
      %333 = vmatpush1.bf16.msra.mxu0 0
      %334 = vmatprep.subr.bf16.mxu0 0
      %335 = vmatpush1.bf16.msra.mxu0 0
      %336 = vmatprep.subr.bf16.mxu0 0
      %337 = vmatpush1.bf16.msra.mxu0 0
      %338 = vmatprep.subr.bf16.mxu0 0
      %339 = vmatpush1.bf16.msra.mxu0 0
      %340 = vmatprep.subr.bf16.mxu0 0
      %341 = vmatpush1.bf16.msra.mxu0 0
      %342 = vmatprep.subr.bf16.mxu0 0
      %343 = vmatpush1.bf16.msra.mxu0 0
      %344 = vmatprep.subr.bf16.mxu0 0
      %345 = vmatpush1.bf16.msra.mxu0 0
      %346 = vmatprep.subr.bf16.mxu0 0
      %347 = vmatpush1.bf16.msra.mxu0 0
      %348 = vmatprep.subr.bf16.mxu0 0
      %349 = vmatpush1.bf16.msra.mxu0 0
      %350 = vmatprep.subr.bf16.mxu0 0
      %351 = vmatpush1.bf16.msra.mxu0 0
      %352 = vmatprep.subr.bf16.mxu0 0
      %353 = vmatpush1.bf16.msra.mxu0 0
      %354 = vmatprep.subr.bf16.mxu0 0
      %355 = vmatpush1.bf16.msra.mxu0 0
      %356 = vmatprep.subr.bf16.mxu0 0
      %357 = vmatpush1.bf16.msra.mxu0 0
      %358 = vmatprep.mubr.bf16.mxu0 0
      %359 = vmatmul.mubr.bf16.gmra.mrb[0].mxu0 %v320
      %v360 = vpop.f32.mrb[0].mxu0
      %v361 = vadd.f32 0.0, %v360
      %v362 = vpop.f32.mrb[0].mxu0
      %v363 = vpop.f32.mrb[0].mxu0
      %v364 = vpop.f32.mrb[0].mxu0
      %365 = vdwg.mxu0
      %v366 = vld [vmem:[%s2] sm:$0xff]
      %368 = vset.pattern.permute.xlu0 0
      %369 = vperm.xlu0 %368, %v366
      %v370 = vpop.permute.xlu0 %369
      %v372 = vmul.f32 %v361, %v370
      %v373 = vld [vmem:[%s3] sm:$0xff]
      %375 = vset.pattern.permute.xlu0 0
      %376 = vperm.xlu0 %375, %v373
      %v377 = vpop.permute.xlu0 %376
      %v379 = vadd.f32 %v372, %v377
      %v380 = vmax.f32 %v379, 0.0
      %v381 = vld [vmem:[%s4] sm:$0xf]
      %vm382 = vcmask 7168
      %383 = vst.msk [vmem:[#allocation3] sm:$0xff] %vm382, 0.0
      %385 = vrot.lane.b32.xlu0 %v380, 1
      %v386 = vpop.permute.xlu0 %385
      %vm388 = vcmask 130056
      %389 = vst.msk [vmem:[#allocation3] sm:$0xff] %vm388, %v386
      %vm390 = vcmask 130048
      %391 = vst.msk [vmem:[#allocation3 + $0x8] sm:$0xff] %vm390, %v380
      %392 = vrot.lane.b32.xlu0 %v380, 127
      %v393 = vpop.permute.xlu0 %392
      %vm395 = vcmask 121856
      %396 = vst.msk [vmem:[#allocation3 + $0x10] sm:$0xff] %vm395, %v393
      %vm397 = vcmask 130168
      %398 = vst.msk [vmem:[#allocation3 + $0x10] sm:$0xff] %vm397, 0.0
      %v399 = vld [vmem:[#allocation3] sm:$0xff]
      %v400 = vld [vmem:[#allocation3 + $0x8] sm:$0xff]
      %v401 = vld [vmem:[#allocation3 + $0x10] sm:$0xff]
      %v402 = vpack.c.bf16 %v400, %v399
      %v403 = vpack.c.bf16 %v401, %v401
      %vm404 = vcmask 195584
      %v406 = vsel %vm404, %v381, 0
      %vm408 = vcmask 1043456
      %v410 = vsel %vm408, %v403, 0
      %412 = vmatprep.subr.bf16.mxu0 0
      %413 = vmatpush1.bf16.msra.mxu0 %v402
      %414 = vmatprep.subr.bf16.mxu0 0
      %415 = vmatpush1.bf16.msra.mxu0 %v410
      %416 = vmatprep.subr.bf16.mxu0 0
      %417 = vmatpush1.bf16.msra.mxu0 0
      %418 = vmatprep.subr.bf16.mxu0 0
      %419 = vmatpush1.bf16.msra.mxu0 0
      %420 = vmatprep.subr.bf16.mxu0 0
      %421 = vmatpush1.bf16.msra.mxu0 0
      %422 = vmatprep.subr.bf16.mxu0 0
      %423 = vmatpush1.bf16.msra.mxu0 0
      %424 = vmatprep.subr.bf16.mxu0 0
      %425 = vmatpush1.bf16.msra.mxu0 0
      %426 = vmatprep.subr.bf16.mxu0 0
      %427 = vmatpush1.bf16.msra.mxu0 0
      %428 = vmatprep.subr.bf16.mxu0 0
      %429 = vmatpush1.bf16.msra.mxu0 0
      %430 = vmatprep.subr.bf16.mxu0 0
      %431 = vmatpush1.bf16.msra.mxu0 0
      %432 = vmatprep.subr.bf16.mxu0 0
      %433 = vmatpush1.bf16.msra.mxu0 0
      %434 = vmatprep.subr.bf16.mxu0 0
      %435 = vmatpush1.bf16.msra.mxu0 0
      %436 = vmatprep.subr.bf16.mxu0 0
      %437 = vmatpush1.bf16.msra.mxu0 0
      %438 = vmatprep.subr.bf16.mxu0 0
      %439 = vmatpush1.bf16.msra.mxu0 0
      %440 = vmatprep.subr.bf16.mxu0 0
      %441 = vmatpush1.bf16.msra.mxu0 0
      %442 = vmatprep.subr.bf16.mxu0 0
      %443 = vmatpush1.bf16.msra.mxu0 0
      %444 = vmatprep.mubr.bf16.mxu0 0
      %445 = vmatmul.mubr.bf16.gmra.mrb[0].mxu0 %v406
      %v446 = vpop.f32.mrb[0].mxu0
      %v447 = vadd.f32 0.0, %v446
      %v448 = vpop.f32.mrb[0].mxu0
      %v449 = vpop.f32.mrb[0].mxu0
      %v450 = vpop.f32.mrb[0].mxu0
      %451 = vdwg.mxu0
      %452 = vst.msk [vmem:[%s286] sm:$0xff] %vm390, %v447
      %v453 = vsel %vm390, %v447, 0.0
      %454 = vadd.xlane.f32.xlu0 %v453
      %v455 = vpop.xlane.xlu0 %454
      %456 = vst.msk [vmem:[%s290] sm:$0xff] %vm382, %v455
      %v457 = vmul.f32 %v447, %v447
      %v458 = vsel %vm390, %v457, 0.0
      %459 = vadd.xlane.f32.xlu0 %v458
      %v460 = vpop.xlane.xlu0 %459
      %461 = vst.msk [vmem:[%s294] sm:$0xff] %vm382, %v460
      %p462 = scmp.lt.s32.totalorder %s19, 1
      %s463 = scalar_select %p462, %s19, 1
      %s464 = smul.addr %s463, 8
      %s465 = scalar_lea.vmem %s5, %s464
      %p466 = scmp.lt.s32.totalorder %s19, 1
      %s467 = scalar_select %p466, %s19, 1
      %s468 = smul.addr %s467, 8
      %s469 = scalar_lea.vmem %s6, %s468
      %p470 = scmp.lt.s32.totalorder %s19, 1
      %s471 = scalar_select %p470, %s19, 1
      %s472 = smul.addr %s471, 8
      %s473 = scalar_lea.vmem %s7, %s472
      // Predicated region
      $region41: #{double_conv.4} parent=39 // pred_check
        %p474 = pneg %p147
      $region42: #{double_conv.4} parent=39 // pred_check_branch
        %476 = sbr.rel (%p474) target = $region44
      $region43: #{double_conv.4} parent=39 // pred_region
        _
      $region44: #{double_conv.4} parent=39 // pred_fallthru
        _
      // Predicated region
      $region45: #{double_conv.4} parent=39 // pred_check
        %p477 = pneg %p173
      $region46: #{double_conv.4} parent=39 // pred_check_branch
        %479 = sbr.rel (%p477) target = $region48
      $region47: #{double_conv.4} parent=39 // pred_region
        _
      $region48: #{double_conv.4} parent=39 // pred_fallthru
        _
      // Predicated region
      $region49: #{double_conv.4} parent=39 // pred_check
        %p480 = pneg %p199
      $region50: #{double_conv.4} parent=39 // pred_check_branch
        %482 = sbr.rel (%p480) target = $region52
      $region51: #{double_conv.4} parent=39 // pred_region
        _
      $region52: #{double_conv.4} parent=39 // pred_fallthru
        _
    $region40: #{double_conv.4} parent=5 // pred_fallthru
      _
    %p483 = scmp.le.s32.totalorder 2, %s14
    // Predicated region
    $region53: #{double_conv.4} parent=5 // pred_check
      %p484 = pneg %p483
    $region54: #{double_conv.4} parent=5 // pred_check_branch
      %486 = sbr.rel (%p484) target = $region56
    $region55: #{double_conv.4} parent=5 // pred_region
      %s487 = ssub.s32 %s14, 2
      // Predicated region
      $region57: #{double_conv.4} parent=55 // pred_check
        %p488 = pneg %p153
      $region58: #{double_conv.4} parent=55 // pred_check_branch
        %490 = sbr.rel (%p488) target = $region60
      $region59: #{double_conv.4} parent=55 // pred_region
        %p491 = scmp.lt.s32.totalorder %s20, 1
        %s492 = scalar_select %p491, %s20, 1
        %s493 = smul.addr %s492, 8
        %s494 = scalar_lea.vmem %s5, %s493
      $region60: #{double_conv.4} parent=55 // pred_fallthru
        _
      // Predicated region
      $region61: #{double_conv.4} parent=55 // pred_check
        %p495 = pneg %p179
      $region62: #{double_conv.4} parent=55 // pred_check_branch
        %497 = sbr.rel (%p495) target = $region64
      $region63: #{double_conv.4} parent=55 // pred_region
        %p498 = scmp.lt.s32.totalorder %s20, 1
        %s499 = scalar_select %p498, %s20, 1
        %s500 = smul.addr %s499, 8
        %s501 = scalar_lea.vmem %s6, %s500
      $region64: #{double_conv.4} parent=55 // pred_fallthru
        _
      // Predicated region
      $region65: #{double_conv.4} parent=55 // pred_check
        %p502 = pneg %p205
      $region66: #{double_conv.4} parent=55 // pred_check_branch
        %504 = sbr.rel (%p502) target = $region68
      $region67: #{double_conv.4} parent=55 // pred_region
        %p505 = scmp.lt.s32.totalorder %s20, 1
        %s506 = scalar_select %p505, %s20, 1
        %s507 = smul.addr %s506, 8
        %s508 = scalar_lea.vmem %s7, %s507
      $region68: #{double_conv.4} parent=55 // pred_fallthru
        _
    $region56: #{double_conv.4} parent=5 // pred_fallthru
      _
  $region6: #{double_conv.4} parent=0 // loop_footer
    %s18 = sadd.s32 1, %s14
  $region7: #{double_conv.4} parent=0 // loop_footer_branch
    %13 = sbr.rel target = $region3
  $region8: #{double_conv.4} parent=0 // loop_exit
    _

</llo_original>
